<compile_context>
chip_gen: v6e
topology: v6e:2x2x1
jax: 0.10.0
libtpu: 0.0.40
codegen_flags: <defaults>
</compile_context>

<pallas_src>
import functools

import numpy as np
import jax
import jax.numpy as jnp
from jax.experimental import pallas as pl
from jax.experimental.pallas import tpu as pltpu


LEAKY_SLOPE = 0.2  # TabularNetG uses nn.LeakyReLU(0.2)


def _round_up(x, m):
    return (x + m - 1) // m * m


def _leaky_relu(x, slope=LEAKY_SLOPE):
    # 0 < slope < 1  =>  LeakyReLU(x) == max(x, slope*x)
    return jnp.maximum(x, slope * x)


def tabular_g_kernel(noise_ref, labels_ref,
                     w1n_ref, w1l_ref, b1_ref,
                     w2_ref, b2_ref,
                     w3_ref, b3_ref,
                     wo_ref, bo_ref,
                     cat_ref, masks_ref,
                     out_ref, *, shifts):
    """[noise|labels] -> fc1 -> LReLU -> fc2 -> LReLU -> fc3 -> LReLU -> output
    -> CustomCatGANLayer (per-categorical-group softmax), all in one kernel.

    Matmuls: bf16 operands, f32 accumulation.  Elementwise/epilogue math: f32.
    `shifts` is a static tuple of lane-rotation amounts paired with rows of masks_ref;
    together they implement per-group max and segmented sums over categorical columns.
    """
    f32 = jnp.float32
    bf16 = jnp.bfloat16

    # fc1 — the wrapper-side concat([noise, labels]) is fused as two dots sharing
    # one f32 accumulator.
    h = (jnp.dot(noise_ref[...], w1n_ref[...], preferred_element_type=f32)
         + jnp.dot(labels_ref[...], w1l_ref[...], preferred_element_type=f32)
         + b1_ref[...])
    h = _leaky_relu(h)
    # fc2
    h = jnp.dot(h.astype(bf16), w2_ref[...], preferred_element_type=f32) + b2_ref[...]
    h = _leaky_relu(h)
    # fc3
    h = jnp.dot(h.astype(bf16), w3_ref[...], preferred_element_type=f32) + b3_ref[...]
    h = _leaky_relu(h)
    # output — columns already permuted to [continuous | cat groups] and lane-padded.
    o = jnp.dot(h.astype(bf16), wo_ref[...], preferred_element_type=f32) + bo_ref[...]

    # ---- fused CustomCatGANLayer epilogue (per-group softmax over categorical cols) ---
    # Hoist the categorical-column mask broadcast once (JAX does not CSE broadcasts).
    is_cat = jnp.broadcast_to(cat_ref[...] > 0.0, o.shape)
    group_masks = [masks_ref[i:i + 1, :] for i in range(len(shifts))]

    # Per-group max via lane rotations (XLU) + masked maximum.  Exact per-group shift,
    # so no cross-group exp underflow (unlike a single global categorical max).
    gmax = o
    for m, s in zip(group_masks, shifts):
        rolled = pltpu.roll(o, shift=s, axis=1)
        gmax = jnp.where(m > 0.0, jnp.maximum(gmax, rolled), gmax)

    e = jnp.exp(jnp.where(is_cat, o - gmax, 0.0))        # EUP; 1.0 on non-cat columns
    # Segmented (per-group) sum with the same rotations / masks — no f32 MXU pass.
    denom = e
    for m, s in zip(group_masks, shifts):
        denom = denom + m * pltpu.roll(e, shift=s, axis=1)
    # denom >= 1 at every categorical column (the in-group max contributes exp(0)=1),
    # so the approximate EUP reciprocal is safe (never divides by ~0).
    sm = e * pl.reciprocal(denom, approx=True)
    out_ref[...] = jnp.where(is_cat, sm, o).astype(out_ref.dtype)


def prepare_params(params, nz, nc, H, out_dim, cat_mask, group_sizes,
                   lane=128, sub=16):
    """One-time static re-layout of TabularNetG parameters for the fused kernel:
      * split fc1 weight into noise / label parts (fuses the input concat)
      * permute output columns to [continuous | categorical groups...] (fuses the
        CustomCatGANLayer column gather — its output order is [cont | cat])
      * zero-pad hidden / output widths to 128 lanes, contraction dims to bf16 sublanes
      * cast matmul weights to bf16 (f32 accumulation in-kernel), biases stay f32
      * build the categorical-column mask and the (shift, group-membership-mask) pairs
        used by the roll-based per-group max / segmented-sum epilogue.
    """
    cat_mask = np.asarray(cat_mask, dtype=bool)
    cont_idx = np.where(~cat_mask)[0]
    cat_idx = np.where(cat_mask)[0]
    assert int(sum(int(g) for g in group_sizes)) == len(cat_idx)
    perm = np.concatenate([cont_idx, cat_idx]).astype(np.int64)
    n_cont = len(cont_idx)

    Hp = _round_up(max(H, lane), lane)
    OutP = _round_up(max(out_dim, lane), lane)
    NZp = _round_up(nz, sub)
    NCp = _round_up(nc, sub)

    w1 = np.asarray(params["w1"], np.float32)   # (nz+nc, H)
    b1 = np.asarray(params["b1"], np.float32)   # (1, H)
    w2 = np.asarray(params["w2"], np.float32)
    b2 = np.asarray(params["b2"], np.float32)
    w3 = np.asarray(params["w3"], np.float32)
    b3 = np.asarray(params["b3"], np.float32)
    wo = np.asarray(params["wo"], np.float32)   # (H, out_dim)
    bo = np.asarray(params["bo"], np.float32)

    def pad(a, shape):
        out = np.zeros(shape, np.float32)
        out[:a.shape[0], :a.shape[1]] = a
        return out

    w1n = pad(w1[:nz, :], (NZp, Hp))
    w1l = pad(w1[nz:, :], (NCp, Hp))
    w2p = pad(w2, (Hp, Hp))
    w3p = pad(w3, (Hp, Hp))
    wop = pad(wo[:, perm], (Hp, OutP))
    b1p = pad(b1, (1, Hp))
    b2p = pad(b2, (1, Hp))
    b3p = pad(b3, (1, Hp))
    bop = pad(bo[:, perm], (1, OutP))

    cat_vec = np.zeros((1, OutP), np.float32)
    cat_vec[0, n_cont:n_cont + len(cat_idx)] = 1.0

    # Group id per (permuted, padded) output column; -1 = continuous / padding.
    group_id = np.full(OutP, -1, np.int64)
    off = n_cont
    for gi, g in enumerate(group_sizes):
        group_id[off:off + int(g)] = gi
        off += int(g)

    # Rotation amounts + membership masks:  roll(x, s)[j] == x[(j - s) mod OutP],
    # mask[j] == 1 iff column (j - signed_offset) belongs to the same group as column j.
    g_max = max([int(g) for g in group_sizes], default=1)
    shifts, rows = [], []
    for d in range(1, g_max):
        for dd in (d, -d):
            row = np.zeros(OutP, np.float32)
            for j in range(OutP):
                k = j - dd
                if 0 <= k < OutP and group_id[j] >= 0 and group_id[k] == group_id[j]:
                    row[j] = 1.0
            shifts.append(dd % OutP)
            rows.append(row)
    if not rows:   # no categorical group wider than 1 column — keep shapes non-empty
        shifts.append(1)
        rows.append(np.zeros(OutP, np.float32))
    masks = np.stack(rows, axis=0)   # (n_shifts, OutP)
    # TODO(synk): roll count scales with max group size; for very wide categorical
    # variables a bf16 block-diagonal MXU segmented-sum would scale better.

    bf16 = jnp.bfloat16
    return dict(
        w1n=jnp.asarray(w1n, bf16), w1l=jnp.asarray(w1l, bf16), b1=jnp.asarray(b1p),
        w2=jnp.asarray(w2p, bf16), b2=jnp.asarray(b2p),
        w3=jnp.asarray(w3p, bf16), b3=jnp.asarray(b3p),
        wo=jnp.asarray(wop, bf16), bo=jnp.asarray(bop),
        cat=jnp.asarray(cat_vec), masks=jnp.asarray(masks), shifts=tuple(shifts),
        nz=nz, nc=nc, out_dim=out_dim, NZp=NZp, NCp=NCp, Hp=Hp, OutP=OutP)


def tabular_net_g_forward(noise, labels, prep, *, max_tb=1024, min_tiles=2):
    """Full TabularNetG.forward.  The wrapper only (optionally) zero-pads the bf16 inputs
    and slices the padded kernel output back to (B, out_dim) f32 (matching the module's
    `.view(-1, out_dim)` on the CCGL output, whose column order is [cont | cat groups])."""
    B = noise.shape[0]
    nz, nc = prep["nz"], prep["nc"]
    NZp, NCp, Hp, OutP = prep["NZp"], prep["NCp"], prep["Hp"], prep["OutP"]
    out_dim = prep["out_dim"]
    shifts = prep["shifts"]
    n_shifts = prep["masks"].shape[0]

    # Batch tile: as large as possible (the kernel is grid-step-overhead / writeback
    # bound), but split into at least `min_tiles` grid steps so v7x's two TensorCores
    # both get work when the batch axis is sharded ("parallel").
    TB = min(max_tb, max(16, _round_up(-(-B // min_tiles), 16)))
    Bp = max(_round_up(B, TB), min_tiles * TB)

    # Avoid double-materializing padded inputs: cast + pad fuse in XLA, and padding is
    # skipped entirely when shapes are already aligned.
    noise_b = noise.astype(jnp.bfloat16)
    if Bp != B or NZp != nz:
        noise_b = jnp.pad(noise_b, ((0, Bp - B), (0, NZp - nz)))
    labels_b = labels.astype(jnp.bfloat16)
    if Bp != B or NCp != nc:
        labels_b = jnp.pad(labels_b, ((0, Bp - B), (0, NCp - nc)))

    resident = lambda i: (0, 0)   # weights / epilogue constants: same block every step
    batched = lambda i: (i, 0)    # activations / output: stream per batch tile

    kernel = functools.partial(tabular_g_kernel, shifts=shifts)

    out = pl.pallas_call(
        kernel,
        out_shape=jax.ShapeDtypeStruct((Bp, OutP), jnp.bfloat16),   # bf16 writeback
        grid=(Bp // TB,),
        in_specs=[
            pl.BlockSpec((TB, NZp), batched),        # noise
            pl.BlockSpec((TB, NCp), batched),        # labels
            pl.BlockSpec((NZp, Hp), resident),       # w1 (noise part)
            pl.BlockSpec((NCp, Hp), resident),       # w1 (label part)
            pl.BlockSpec((1, Hp), resident),         # b1
            pl.BlockSpec((Hp, Hp), resident),        # w2
            pl.BlockSpec((1, Hp), resident),         # b2
            pl.BlockSpec((Hp, Hp), resident),        # w3
            pl.BlockSpec((1, Hp), resident),         # b3
            pl.BlockSpec((Hp, OutP), resident),      # wo (permuted + padded)
            pl.BlockSpec((1, OutP), resident),       # bo
            pl.BlockSpec((1, OutP), resident),       # categorical-column mask
            pl.BlockSpec((n_shifts, OutP), resident),  # group-membership masks per shift
        ],
        out_specs=pl.BlockSpec((TB, OutP), batched),
        compiler_params=pltpu.CompilerParams(
            dimension_semantics=("parallel",),       # batch tiles shard across TCs (v7x)
            vmem_limit_bytes=32 * 1024 * 1024),      # explicit: safe on v5e/v6e/v7x
    )(noise_b, labels_b,
      prep["w1n"], prep["w1l"], prep["b1"],
      prep["w2"], prep["b2"], prep["w3"], prep["b3"],
      prep["wo"], prep["bo"], prep["cat"], prep["masks"])

    return out[:B, :out_dim].astype(jnp.float32)


def _reference_forward(noise, labels, params, cat_mask, group_sizes):
    """Pure-JAX reference of TabularNetG.forward (original weights, original
    CustomCatGANLayer glue), with bf16-rounded matmul operands to match the kernel's
    bf16-weight / f32-accumulate numerics for the tolerance check."""
    def lrelu(x):
        return jnp.where(x > 0, x, LEAKY_SLOPE * x)
    bf = lambda a: a.astype(jnp.bfloat16).astype(jnp.float32)
    x = jnp.concatenate([noise, labels], axis=1)
    h = lrelu(bf(x) @ bf(params["w1"]) + params["b1"])
    h = lrelu(bf(h) @ bf(params["w2"]) + params["b2"])
    h = lrelu(bf(h) @ bf(params["w3"]) + params["b3"])
    o = bf(h) @ bf(params["wo"]) + params["bo"]
    cat_mask = np.asarray(cat_mask, dtype=bool)
    cont = o[:, np.where(~cat_mask)[0]]
    cat = o[:, np.where(cat_mask)[0]]
    parts, curr = [], 0
    for g in group_sizes:
        parts.append(jax.nn.softmax(cat[:, curr:curr + g], axis=-1))
        curr += g
    catted = jnp.concatenate(parts, axis=1) if parts else cat
    return jnp.concatenate([cont, catted], axis=1).reshape(-1, o.shape[1])


def init_params(key, nz, nc, H, out_dim):
    """Deterministic init matching TabularNetG.custom_weights_init:
       Linear weights ~ U(-0.5, 0.5); biases ~ U(-1/sqrt(fan_in), 1/sqrt(fan_in))."""
    ks = jax.random.split(key, 8)
    in_dim = nz + nc

    def lin(kw, kb, fan_in, fan_out):
        w = jax.random.uniform(kw, (fan_out, fan_in), jnp.float32, -0.5, 0.5)  # torch (out,in)
        bound = 1.0 / np.sqrt(fan_in)
        b = jax.random.uniform(kb, (1, fan_out), jnp.float32, -bound, bound)
        return w.T, b  # store as (in, out) for x @ W

    w1, b1 = lin(ks[0], ks[1], in_dim, H)
    w2, b2 = lin(ks[2], ks[3], H, H)
    w3, b3 = lin(ks[4], ks[5], H, H)
    wo, bo = lin(ks[6], ks[7], H, out_dim)
    return dict(w1=w1, b1=b1, w2=w2, b2=b2, w3=w3, b3=b3, wo=wo, bo=bo)


if __name__ == "__main__":
    # Small shapes consistent with the module: nz=32 noise dims, nc=4 one-hot label dims,
    # H=32 hidden, out_dim=8 tabular columns (2 continuous + two categorical groups of 3).
    B, nz, nc, H, out_dim = 2, 32, 4, 32, 8
    cat_mask = np.array([False, False, True, True, True, True, True, True])
    group_sizes = (3, 3)  # len(le.classes_) per categorical variable in le_dict

    key = jax.random.PRNGKey(0)
    k_noise, k_lab, k_par = jax.random.split(key, 3)
    noise = jax.random.normal(k_noise, (B, nz), jnp.float32)
    lab_ids = jax.random.randint(k_lab, (B,), 0, nc)
    labels = jax.nn.one_hot(lab_ids, nc, dtype=jnp.float32)  # label embedding
    params = init_params(k_par, nz, nc, H, out_dim)

    prep = prepare_params(params, nz, nc, H, out_dim, cat_mask, group_sizes)
    out = jax.block_until_ready(tabular_net_g_forward(noise, labels, prep))

    ref = jax.block_until_ready(
        _reference_forward(noise, labels, params, cat_mask, group_sizes))
    np.testing.assert_allclose(np.asarray(out), np.asarray(ref), rtol=1e-2, atol=1e-2)
    assert out.shape == (B, out_dim)

    # TODO(synk): training-side members (BCELoss, Adam step, weight/grad history) are not
    # part of forward() and are intentionally not ported.
    print("KERNEL_OK")
</pallas_src>

<mosaic_0001>
module attributes {stable_mosaic.version = 11 : i64} {
  func.func @tabular_g_kernel(%arg0: i32, %arg1: memref<16x32xbf16, #tpu.memory_space<vmem>>, %arg2: memref<16x16xbf16, #tpu.memory_space<vmem>>, %arg3: memref<32x128xbf16, #tpu.memory_space<vmem>>, %arg4: memref<16x128xbf16, #tpu.memory_space<vmem>>, %arg5: memref<1x128xf32, #tpu.memory_space<vmem>>, %arg6: memref<128x128xbf16, #tpu.memory_space<vmem>>, %arg7: memref<1x128xf32, #tpu.memory_space<vmem>>, %arg8: memref<128x128xbf16, #tpu.memory_space<vmem>>, %arg9: memref<1x128xf32, #tpu.memory_space<vmem>>, %arg10: memref<128x128xbf16, #tpu.memory_space<vmem>>, %arg11: memref<1x128xf32, #tpu.memory_space<vmem>>, %arg12: memref<1x128xf32, #tpu.memory_space<vmem>>, %arg13: memref<4x128xf32, #tpu.memory_space<vmem>>, %arg14: memref<16x128xbf16, #tpu.memory_space<vmem>>) attributes {dimension_semantics = [#tpu.dimension_semantics<parallel>], iteration_bounds = array<i64: 2>, scalar_prefetch = 0 : i64, scratch_operands = 0 : i64, tpu.core_type = #tpu.core_type<tc>, window_params = [{transform_indices = @transform_0, window_bounds = array<i64: 16, 32>}, {transform_indices = @transform_1, window_bounds = array<i64: 16, 16>}, {pipeline_mode = #tpu.pipeline_mode<synchronous>, transform_indices = @transform_2, window_bounds = array<i64: 32, 128>}, {pipeline_mode = #tpu.pipeline_mode<synchronous>, transform_indices = @transform_3, window_bounds = array<i64: 16, 128>}, {pipeline_mode = #tpu.pipeline_mode<synchronous>, transform_indices = @transform_4, window_bounds = array<i64: 1, 128>}, {pipeline_mode = #tpu.pipeline_mode<synchronous>, transform_indices = @transform_5, window_bounds = array<i64: 128, 128>}, {pipeline_mode = #tpu.pipeline_mode<synchronous>, transform_indices = @transform_6, window_bounds = array<i64: 1, 128>}, {pipeline_mode = #tpu.pipeline_mode<synchronous>, transform_indices = @transform_7, window_bounds = array<i64: 128, 128>}, {pipeline_mode = #tpu.pipeline_mode<synchronous>, transform_indices = @transform_8, window_bounds = array<i64: 1, 128>}, {pipeline_mode = #tpu.pipeline_mode<synchronous>, transform_indices = @transform_9, window_bounds = array<i64: 128, 128>}, {pipeline_mode = #tpu.pipeline_mode<synchronous>, transform_indices = @transform_10, window_bounds = array<i64: 1, 128>}, {pipeline_mode = #tpu.pipeline_mode<synchronous>, transform_indices = @transform_11, window_bounds = array<i64: 1, 128>}, {pipeline_mode = #tpu.pipeline_mode<synchronous>, transform_indices = @transform_12, window_bounds = array<i64: 4, 128>}, {transform_indices = @transform_13, window_bounds = array<i64: 16, 128>}]} {
    %c0 = arith.constant 0 : index
    %c0_0 = arith.constant 0 : index
    %0 = vector.load %arg1[%c0, %c0_0] : memref<16x32xbf16, #tpu.memory_space<vmem>>, vector<16x32xbf16>
    %c0_1 = arith.constant 0 : index
    %c0_2 = arith.constant 0 : index
    %1 = vector.load %arg3[%c0_1, %c0_2] : memref<32x128xbf16, #tpu.memory_space<vmem>>, vector<32x128xbf16>
    %cst = arith.constant dense<0.000000e+00> : vector<16x128xf32>
    %2 = tpu.matmul %0, %1, %cst {dimension_numbers = #tpu.dot_dimension_numbers<[1], [0], [0], [1], [0, 0, 1, 1], [], []>} : vector<16x32xbf16>, vector<32x128xbf16>, vector<16x128xf32> -> vector<16x128xf32>
    %c0_3 = arith.constant 0 : index
    %c0_4 = arith.constant 0 : index
    %3 = vector.load %arg2[%c0_3, %c0_4] : memref<16x16xbf16, #tpu.memory_space<vmem>>, vector<16x16xbf16>
    %c0_5 = arith.constant 0 : index
    %c0_6 = arith.constant 0 : index
    %4 = vector.load %arg4[%c0_5, %c0_6] : memref<16x128xbf16, #tpu.memory_space<vmem>>, vector<16x128xbf16>
    %cst_7 = arith.constant dense<0.000000e+00> : vector<16x128xf32>
    %5 = tpu.matmul %3, %4, %cst_7 {dimension_numbers = #tpu.dot_dimension_numbers<[1], [0], [0], [1], [0, 0, 1, 1], [], []>} : vector<16x16xbf16>, vector<16x128xbf16>, vector<16x128xf32> -> vector<16x128xf32>
    %6 = arith.addf %2, %5 : vector<16x128xf32>
    %c0_8 = arith.constant 0 : index
    %c0_9 = arith.constant 0 : index
    %7 = vector.load %arg5[%c0_8, %c0_9] : memref<1x128xf32, #tpu.memory_space<vmem>>, vector<1x128xf32>
    %8 = vector.broadcast %7 : vector<1x128xf32> to vector<16x128xf32>
    %9 = arith.addf %6, %8 : vector<16x128xf32>
    %cst_10 = arith.constant 2.000000e-01 : f32
    %10 = vector.broadcast %cst_10 : f32 to vector<16x128xf32>
    %11 = arith.mulf %10, %9 : vector<16x128xf32>
    %12 = arith.maximumf %9, %11 : vector<16x128xf32>
    %13 = arith.truncf %12 : vector<16x128xf32> to vector<16x128xbf16>
    %c0_11 = arith.constant 0 : index
    %c0_12 = arith.constant 0 : index
    %14 = vector.load %arg6[%c0_11, %c0_12] : memref<128x128xbf16, #tpu.memory_space<vmem>>, vector<128x128xbf16>
    %cst_13 = arith.constant dense<0.000000e+00> : vector<16x128xf32>
    %15 = tpu.matmul %13, %14, %cst_13 {dimension_numbers = #tpu.dot_dimension_numbers<[1], [0], [0], [1], [0, 0, 1, 1], [], []>} : vector<16x128xbf16>, vector<128x128xbf16>, vector<16x128xf32> -> vector<16x128xf32>
    %c0_14 = arith.constant 0 : index
    %c0_15 = arith.constant 0 : index
    %16 = vector.load %arg7[%c0_14, %c0_15] : memref<1x128xf32, #tpu.memory_space<vmem>>, vector<1x128xf32>
    %17 = vector.broadcast %16 : vector<1x128xf32> to vector<16x128xf32>
    %18 = arith.addf %15, %17 : vector<16x128xf32>
    %cst_16 = arith.constant 2.000000e-01 : f32
    %19 = vector.broadcast %cst_16 : f32 to vector<16x128xf32>
    %20 = arith.mulf %19, %18 : vector<16x128xf32>
    %21 = arith.maximumf %18, %20 : vector<16x128xf32>
    %22 = arith.truncf %21 : vector<16x128xf32> to vector<16x128xbf16>
    %c0_17 = arith.constant 0 : index
    %c0_18 = arith.constant 0 : index
    %23 = vector.load %arg8[%c0_17, %c0_18] : memref<128x128xbf16, #tpu.memory_space<vmem>>, vector<128x128xbf16>
    %cst_19 = arith.constant dense<0.000000e+00> : vector<16x128xf32>
    %24 = tpu.matmul %22, %23, %cst_19 {dimension_numbers = #tpu.dot_dimension_numbers<[1], [0], [0], [1], [0, 0, 1, 1], [], []>} : vector<16x128xbf16>, vector<128x128xbf16>, vector<16x128xf32> -> vector<16x128xf32>
    %c0_20 = arith.constant 0 : index
    %c0_21 = arith.constant 0 : index
    %25 = vector.load %arg9[%c0_20, %c0_21] : memref<1x128xf32, #tpu.memory_space<vmem>>, vector<1x128xf32>
    %26 = vector.broadcast %25 : vector<1x128xf32> to vector<16x128xf32>
    %27 = arith.addf %24, %26 : vector<16x128xf32>
    %cst_22 = arith.constant 2.000000e-01 : f32
    %28 = vector.broadcast %cst_22 : f32 to vector<16x128xf32>
    %29 = arith.mulf %28, %27 : vector<16x128xf32>
    %30 = arith.maximumf %27, %29 : vector<16x128xf32>
    %31 = arith.truncf %30 : vector<16x128xf32> to vector<16x128xbf16>
    %c0_23 = arith.constant 0 : index
    %c0_24 = arith.constant 0 : index
    %32 = vector.load %arg10[%c0_23, %c0_24] : memref<128x128xbf16, #tpu.memory_space<vmem>>, vector<128x128xbf16>
    %cst_25 = arith.constant dense<0.000000e+00> : vector<16x128xf32>
    %33 = tpu.matmul %31, %32, %cst_25 {dimension_numbers = #tpu.dot_dimension_numbers<[1], [0], [0], [1], [0, 0, 1, 1], [], []>} : vector<16x128xbf16>, vector<128x128xbf16>, vector<16x128xf32> -> vector<16x128xf32>
    %c0_26 = arith.constant 0 : index
    %c0_27 = arith.constant 0 : index
    %34 = vector.load %arg11[%c0_26, %c0_27] : memref<1x128xf32, #tpu.memory_space<vmem>>, vector<1x128xf32>
    %35 = vector.broadcast %34 : vector<1x128xf32> to vector<16x128xf32>
    %36 = arith.addf %33, %35 : vector<16x128xf32>
    %c0_28 = arith.constant 0 : index
    %c0_29 = arith.constant 0 : index
    %37 = vector.load %arg12[%c0_28, %c0_29] : memref<1x128xf32, #tpu.memory_space<vmem>>, vector<1x128xf32>
    %cst_30 = arith.constant 0.000000e+00 : f32
    %38 = vector.broadcast %cst_30 : f32 to vector<1x128xf32>
    %39 = arith.cmpf ogt, %37, %38 : vector<1x128xf32>
    %40 = vector.shape_cast %39 : vector<1x128xi1> to vector<1x128xi1>
    %41 = vector.broadcast %40 : vector<1x128xi1> to vector<16x128xi1>
    %c0_31 = arith.constant 0 : index
    %c0_32 = arith.constant 0 : index
    %42 = vector.load %arg13[%c0_31, %c0_32] : memref<4x128xf32, #tpu.memory_space<vmem>>, vector<1x128xf32>
    %c1 = arith.constant 1 : index
    %c0_33 = arith.constant 0 : index
    %43 = vector.load %arg13[%c1, %c0_33] : memref<4x128xf32, #tpu.memory_space<vmem>>, vector<1x128xf32>
    %c2 = arith.constant 2 : index
    %c0_34 = arith.constant 0 : index
    %44 = vector.load %arg13[%c2, %c0_34] : memref<4x128xf32, #tpu.memory_space<vmem>>, vector<1x128xf32>
    %c3 = arith.constant 3 : index
    %c0_35 = arith.constant 0 : index
    %45 = vector.load %arg13[%c3, %c0_35] : memref<4x128xf32, #tpu.memory_space<vmem>>, vector<1x128xf32>
    %c1_i32 = arith.constant 1 : i32
    %46 = tpu.dynamic_rotate %36 by %c1_i32 dim 1 : vector<16x128xf32>, i32 -> vector<16x128xf32>
    %cst_36 = arith.constant 0.000000e+00 : f32
    %47 = vector.broadcast %cst_36 : f32 to vector<1x128xf32>
    %48 = arith.cmpf ogt, %42, %47 : vector<1x128xf32>
    %49 = arith.maximumf %36, %46 : vector<16x128xf32>
    %50 = vector.shape_cast %48 : vector<1x128xi1> to vector<1x128xi1>
    %51 = vector.broadcast %50 : vector<1x128xi1> to vector<16x128xi1>
    %52 = arith.select %51, %49, %36 : vector<16x128xi1>, vector<16x128xf32>
    %c127_i32 = arith.constant 127 : i32
    %53 = tpu.dynamic_rotate %36 by %c127_i32 dim 1 : vector<16x128xf32>, i32 -> vector<16x128xf32>
    %cst_37 = arith.constant 0.000000e+00 : f32
    %54 = vector.broadcast %cst_37 : f32 to vector<1x128xf32>
    %55 = arith.cmpf ogt, %43, %54 : vector<1x128xf32>
    %56 = arith.maximumf %52, %53 : vector<16x128xf32>
    %57 = vector.shape_cast %55 : vector<1x128xi1> to vector<1x128xi1>
    %58 = vector.broadcast %57 : vector<1x128xi1> to vector<16x128xi1>
    %59 = arith.select %58, %56, %52 : vector<16x128xi1>, vector<16x128xf32>
    %c2_i32 = arith.constant 2 : i32
    %60 = tpu.dynamic_rotate %36 by %c2_i32 dim 1 : vector<16x128xf32>, i32 -> vector<16x128xf32>
    %cst_38 = arith.constant 0.000000e+00 : f32
    %61 = vector.broadcast %cst_38 : f32 to vector<1x128xf32>
    %62 = arith.cmpf ogt, %44, %61 : vector<1x128xf32>
    %63 = arith.maximumf %59, %60 : vector<16x128xf32>
    %64 = vector.shape_cast %62 : vector<1x128xi1> to vector<1x128xi1>
    %65 = vector.broadcast %64 : vector<1x128xi1> to vector<16x128xi1>
    %66 = arith.select %65, %63, %59 : vector<16x128xi1>, vector<16x128xf32>
    %c126_i32 = arith.constant 126 : i32
    %67 = tpu.dynamic_rotate %36 by %c126_i32 dim 1 : vector<16x128xf32>, i32 -> vector<16x128xf32>
    %cst_39 = arith.constant 0.000000e+00 : f32
    %68 = vector.broadcast %cst_39 : f32 to vector<1x128xf32>
    %69 = arith.cmpf ogt, %45, %68 : vector<1x128xf32>
    %70 = arith.maximumf %66, %67 : vector<16x128xf32>
    %71 = vector.shape_cast %69 : vector<1x128xi1> to vector<1x128xi1>
    %72 = vector.broadcast %71 : vector<1x128xi1> to vector<16x128xi1>
    %73 = arith.select %72, %70, %66 : vector<16x128xi1>, vector<16x128xf32>
    %74 = arith.subf %36, %73 : vector<16x128xf32>
    %cst_40 = arith.constant 0.000000e+00 : f32
    %75 = vector.broadcast %cst_40 : f32 to vector<16x128xf32>
    %76 = arith.select %41, %74, %75 : vector<16x128xi1>, vector<16x128xf32>
    %77 = math.exp %76 : vector<16x128xf32>
    %c1_i32_41 = arith.constant 1 : i32
    %78 = tpu.dynamic_rotate %77 by %c1_i32_41 dim 1 : vector<16x128xf32>, i32 -> vector<16x128xf32>
    %79 = vector.broadcast %42 : vector<1x128xf32> to vector<16x128xf32>
    %80 = arith.mulf %79, %78 : vector<16x128xf32>
    %81 = arith.addf %77, %80 : vector<16x128xf32>
    %c127_i32_42 = arith.constant 127 : i32
    %82 = tpu.dynamic_rotate %77 by %c127_i32_42 dim 1 : vector<16x128xf32>, i32 -> vector<16x128xf32>
    %83 = vector.broadcast %43 : vector<1x128xf32> to vector<16x128xf32>
    %84 = arith.mulf %83, %82 : vector<16x128xf32>
    %85 = arith.addf %81, %84 : vector<16x128xf32>
    %c2_i32_43 = arith.constant 2 : i32
    %86 = tpu.dynamic_rotate %77 by %c2_i32_43 dim 1 : vector<16x128xf32>, i32 -> vector<16x128xf32>
    %87 = vector.broadcast %44 : vector<1x128xf32> to vector<16x128xf32>
    %88 = arith.mulf %87, %86 : vector<16x128xf32>
    %89 = arith.addf %85, %88 : vector<16x128xf32>
    %c126_i32_44 = arith.constant 126 : i32
    %90 = tpu.dynamic_rotate %77 by %c126_i32_44 dim 1 : vector<16x128xf32>, i32 -> vector<16x128xf32>
    %91 = vector.broadcast %45 : vector<1x128xf32> to vector<16x128xf32>
    %92 = arith.mulf %91, %90 : vector<16x128xf32>
    %93 = arith.addf %89, %92 : vector<16x128xf32>
    %94 = tpu.reciprocal %93 {approx = true} : vector<16x128xf32> -> vector<16x128xf32>
    %95 = arith.mulf %77, %94 : vector<16x128xf32>
    %96 = arith.select %41, %95, %36 : vector<16x128xi1>, vector<16x128xf32>
    %97 = arith.truncf %96 : vector<16x128xf32> to vector<16x128xbf16>
    %c0_45 = arith.constant 0 : index
    %c0_46 = arith.constant 0 : index
    %98 = vector.load %arg14[%c0_45, %c0_46] : memref<16x128xbf16, #tpu.memory_space<vmem>>, vector<16x128xbf16>
    tpu.vector_store %arg14[%c0_45, %c0_46], %97 {strides = array<i32>} : memref<16x128xbf16, #tpu.memory_space<vmem>>, vector<16x128xbf16>,
    return
  }
  func.func @transform_0(%arg0: i32) -> (i32, i32) {
    %c0_i32 = arith.constant 0 : i32
    %c0_i32_0 = arith.constant 0 : i32
    return %arg0, %c0_i32 : i32, i32
  }
  func.func @transform_1(%arg0: i32) -> (i32, i32) {
    %c0_i32 = arith.constant 0 : i32
    %c0_i32_0 = arith.constant 0 : i32
    return %arg0, %c0_i32 : i32, i32
  }
  func.func @transform_2(%arg0: i32) -> (i32, i32) {
    %c0_i32 = arith.constant 0 : i32
    %c0_i32_0 = arith.constant 0 : i32
    %c0_i32_1 = arith.constant 0 : i32
    return %c0_i32, %c0_i32_0 : i32, i32
  }
  func.func @transform_3(%arg0: i32) -> (i32, i32) {
    %c0_i32 = arith.constant 0 : i32
    %c0_i32_0 = arith.constant 0 : i32
    %c0_i32_1 = arith.constant 0 : i32
    return %c0_i32, %c0_i32_0 : i32, i32
  }
  func.func @transform_4(%arg0: i32) -> (i32, i32) {
    %c0_i32 = arith.constant 0 : i32
    %c0_i32_0 = arith.constant 0 : i32
    %c0_i32_1 = arith.constant 0 : i32
    return %c0_i32, %c0_i32_0 : i32, i32
  }
  func.func @transform_5(%arg0: i32) -> (i32, i32) {
    %c0_i32 = arith.constant 0 : i32
    %c0_i32_0 = arith.constant 0 : i32
    %c0_i32_1 = arith.constant 0 : i32
    return %c0_i32, %c0_i32_0 : i32, i32
  }
  func.func @transform_6(%arg0: i32) -> (i32, i32) {
    %c0_i32 = arith.constant 0 : i32
    %c0_i32_0 = arith.constant 0 : i32
    %c0_i32_1 = arith.constant 0 : i32
    return %c0_i32, %c0_i32_0 : i32, i32
  }
  func.func @transform_7(%arg0: i32) -> (i32, i32) {
    %c0_i32 = arith.constant 0 : i32
    %c0_i32_0 = arith.constant 0 : i32
    %c0_i32_1 = arith.constant 0 : i32
    return %c0_i32, %c0_i32_0 : i32, i32
  }
  func.func @transform_8(%arg0: i32) -> (i32, i32) {
    %c0_i32 = arith.constant 0 : i32
    %c0_i32_0 = arith.constant 0 : i32
    %c0_i32_1 = arith.constant 0 : i32
    return %c0_i32, %c0_i32_0 : i32, i32
  }
  func.func @transform_9(%arg0: i32) -> (i32, i32) {
    %c0_i32 = arith.constant 0 : i32
    %c0_i32_0 = arith.constant 0 : i32
    %c0_i32_1 = arith.constant 0 : i32
    return %c0_i32, %c0_i32_0 : i32, i32
  }
  func.func @transform_10(%arg0: i32) -> (i32, i32) {
    %c0_i32 = arith.constant 0 : i32
    %c0_i32_0 = arith.constant 0 : i32
    %c0_i32_1 = arith.constant 0 : i32
    return %c0_i32, %c0_i32_0 : i32, i32
  }
  func.func @transform_11(%arg0: i32) -> (i32, i32) {
    %c0_i32 = arith.constant 0 : i32
    %c0_i32_0 = arith.constant 0 : i32
    %c0_i32_1 = arith.constant 0 : i32
    return %c0_i32, %c0_i32_0 : i32, i32
  }
  func.func @transform_12(%arg0: i32) -> (i32, i32) {
    %c0_i32 = arith.constant 0 : i32
    %c0_i32_0 = arith.constant 0 : i32
    %c0_i32_1 = arith.constant 0 : i32
    return %c0_i32, %c0_i32_0 : i32, i32
  }
  func.func @transform_13(%arg0: i32) -> (i32, i32) {
    %c0_i32 = arith.constant 0 : i32
    %c0_i32_0 = arith.constant 0 : i32
    return %arg0, %c0_i32 : i32, i32
  }
}

</mosaic_0001>

<llo_original>
// kernel: tpu_custom_call.1
$region0: #{tpu_custom_call.1}
  #allocation0 [shape = 'u32[]', space=smem, size = 0x4, offset = 0x4, fixed_abs, tag = 'smem constant byte address 0x4 - core index']
  #allocation1 [shape = 'u32[144,128]{1,0:T(1,128)}', space=vmem, size = 0x12000, scoped, tag = 'internal scratch']
  %s0 = inlined_call_operand.vmem [shape: bf16[32,32], index: 0, kind: input, shape index: {}]
  %s1 = inlined_call_operand.vmem [shape: bf16[32,16], index: 1, kind: input, shape index: {}]
  %s2 = inlined_call_operand.hbm [shape: bf16[32,128], index: 2, kind: input, shape index: {}]
  %s3 = inlined_call_operand.vmem [shape: bf16[16,128], index: 3, kind: input, shape index: {}]
  %s4 = inlined_call_operand.vmem [shape: f32[1,128], index: 4, kind: input, shape index: {}]
  %s5 = inlined_call_operand.hbm [shape: bf16[128,128], index: 5, kind: input, shape index: {}]
  %s6 = inlined_call_operand.vmem [shape: f32[1,128], index: 6, kind: input, shape index: {}]
  %s7 = inlined_call_operand.hbm [shape: bf16[128,128], index: 7, kind: input, shape index: {}]
  %s8 = inlined_call_operand.vmem [shape: f32[1,128], index: 8, kind: input, shape index: {}]
  %s9 = inlined_call_operand.hbm [shape: bf16[128,128], index: 9, kind: input, shape index: {}]
  %s10 = inlined_call_operand.vmem [shape: f32[1,128], index: 10, kind: input, shape index: {}]
  %s11 = inlined_call_operand.vmem [shape: f32[1,128], index: 11, kind: input, shape index: {}]
  %s12 = inlined_call_operand.vmem [shape: f32[4,128], index: 12, kind: input, shape index: {}]
  %s13 = inlined_call_operand.hbm [shape: bf16[32,128], index: 13, kind: output, shape index: {}]
  %s14 = sld [smem:[#allocation0]]
  $region101: #{tpu_custom_call.1} parent=0
    _
  %s16 = ssub.s32 1, %s14
  %s17 = scalar_select 0, %s16, %s14
  $region1: #{tpu_custom_call.1} parent=0
    #allocation2 [shape = 'u8[8192]{0}', space=vmem, size = 0x2000, scoped, tag = 'input window, operand 2, single buffered']
    #allocation3 [shape = 's32[2]{0}', space=sflag, size = 0x8, scoped, tag = 'scoped memory for tpu_custom_call.1']
    #allocation4 [shape = 's32[2]{0}', space=sflag, size = 0x8, scoped, tag = 'scoped memory for tpu_custom_call.1']
    #allocation5 [shape = 'u8[32768]{0}', space=vmem, size = 0x8000, scoped, tag = 'input window, operand 5, single buffered']
    #allocation6 [shape = 's32[1]{0}', space=sflag, size = 0x4, scoped, tag = 'scoped memory for tpu_custom_call.1']
    #allocation7 [shape = 'u8[32768]{0}', space=vmem, size = 0x8000, scoped, tag = 'input window, operand 7, single buffered']
    #allocation8 [shape = 'u8[32768]{0}', space=vmem, size = 0x8000, scoped, tag = 'input window, operand 9, single buffered']
    #allocation9 [shape = 's32[1]{0}', space=sflag, size = 0x4, scoped, tag = 'scoped memory for tpu_custom_call.1']
    #allocation10 [shape = 'u8[8192]{0}', space=vmem, size = 0x2000, scoped, tag = 'output window, operand 0']
    %18 = vsyncpa [#allocation3], 0
    %19 = vsyncpa [#allocation6], 0
    %20 = vsyncpa [#allocation9], 0
    %21 = vsyncpa [#allocation4], 0
    %s22 = scalar_lea.sflag [#allocation4], 1
    %23 = vsyncpa %s22, 0
    loop: start=0, step=1, limit=4
    $region2: #{tpu_custom_call.1} parent=1 // loop_pre_header
      _
    $region3: #{tpu_custom_call.1} parent=1 // loop_header
      %s25 = sphi 0, %s29
      %p26 = scmp.ge.s32.totalorder %s25, 4
      %s35 = sphi 0, %s37
      %s38 = sphi 0, %s35
      %s39 = sphi 0, %s38
      %s55 = sphi 0, %s39
      %s61 = sphi 0, %s63
      %s64 = sphi 0, %s61
      %s65 = sphi 0, %s64
      %s81 = sphi 0, %s65
      %s85 = sphi 0, %s85
      %s87 = sphi 0, %s85
      %s88 = sphi 0, %s87
      %s102 = sphi 0, %s88
      %s106 = sphi 0, %s106
      %s108 = sphi 0, %s106
      %s109 = sphi 0, %s108
      %s123 = sphi 0, %s109
      %s127 = sphi 0, %s127
      %s129 = sphi 0, %s127
      %s130 = sphi 0, %s129
      %s144 = sphi 0, %s130
      %s148 = sphi 0, %s148
      %s150 = sphi 0, %s148
      %s151 = sphi 0, %s150
      %s165 = sphi 0, %s151
      %s169 = sphi 0, %s169
      %s171 = sphi 0, %s169
      %s172 = sphi 0, %s171
      %s186 = sphi 0, %s172
      %s190 = sphi 0, %s190
      %s192 = sphi 0, %s190
      %s193 = sphi 0, %s192
      %s207 = sphi 0, %s193
      %s211 = sphi 0, %s211
      %s213 = sphi 0, %s211
      %s214 = sphi 0, %s213
      %s228 = sphi 0, %s214
      %s232 = sphi 0, %s232
      %s234 = sphi 0, %s232
      %s235 = sphi 0, %s234
      %s249 = sphi 0, %s235
      %s253 = sphi 0, %s253
      %s255 = sphi 0, %s253
      %s256 = sphi 0, %s255
      %s270 = sphi 0, %s256
      %s274 = sphi 0, %s274
      %s276 = sphi 0, %s274
      %s277 = sphi 0, %s276
      %s291 = sphi 0, %s277
      %s295 = sphi 0, %s295
      %s297 = sphi 0, %s295
      %s298 = sphi 0, %s297
      %s312 = sphi 0, %s298
      %s318 = sphi 0, %s320
      %s321 = sphi 0, %s318
      %s322 = sphi 0, %s321
      %s338 = sphi 0, %s322
    $region4: #{tpu_custom_call.1} parent=1 // loop_header_branch
      %28 = sbr.rel (%p26) target = $region8
    $region5: #{tpu_custom_call.1} parent=1 // loop_body
      %s30 = ssub.s32 %s25, 1
      %s31 = ssub.s32 %s25, 2
      %s32 = sadd.s32 %s25, 1
      %s33 = ssub.s32 %s25, %s32
      %p34 = scmp.eq.s32.totalorder %s33, 0
      %s36 = sadd.s32 %s35, 1
      %s37 = scalar_select %p34, %s35, %s36
      %p40 = pneg %p34
      %p41 = scmp.eq.s32.totalorder %s25, 1
      %p42 = por %p40, %p41
      %p43 = scmp.ne.s32.totalorder %s35, %s38
      %p44 = scmp.eq.s32.totalorder %s25, 0
      %p45 = por %p43, %p44
      %p46 = scmp.ne.s32.totalorder %s35, %s38
      %p47 = scmp.eq.s32.totalorder %s30, 1
      %p48 = por %p46, %p47
      %p49 = scmp.ne.s32.totalorder %s38, %s39
      %p50 = scmp.eq.s32.totalorder %s30, 0
      %p51 = por %p49, %p50
      %p52 = scmp.ne.s32.totalorder %s38, %s39
      %p53 = scmp.eq.s32.totalorder %s31, 1
      %p54 = por %p52, %p53
      %p56 = scmp.ne.s32.totalorder %s39, %s55
      %p57 = scmp.eq.s32.totalorder %s31, 0
      %p58 = por %p56, %p57
      %s59 = ssub.s32 %s25, %s32
      %p60 = scmp.eq.s32.totalorder %s59, 0
      %s62 = sadd.s32 %s61, 1
      %s63 = scalar_select %p60, %s61, %s62
      %p66 = pneg %p60
      %p67 = scmp.eq.s32.totalorder %s25, 1
      %p68 = por %p66, %p67
      %p69 = scmp.ne.s32.totalorder %s61, %s64
      %p70 = scmp.eq.s32.totalorder %s25, 0
      %p71 = por %p69, %p70
      %p72 = scmp.ne.s32.totalorder %s61, %s64
      %p73 = scmp.eq.s32.totalorder %s30, 1
      %p74 = por %p72, %p73
      %p75 = scmp.ne.s32.totalorder %s64, %s65
      %p76 = scmp.eq.s32.totalorder %s30, 0
      %p77 = por %p75, %p76
      %p78 = scmp.ne.s32.totalorder %s64, %s65
      %p79 = scmp.eq.s32.totalorder %s31, 1
      %p80 = por %p78, %p79
      %p82 = scmp.ne.s32.totalorder %s65, %s81
      %p83 = scmp.eq.s32.totalorder %s31, 0
      %p84 = por %p82, %p83
      %s86 = sadd.s32 %s85, 1
      %p89 = scmp.eq.s32.totalorder %s25, 1
      %p90 = scmp.ne.s32.totalorder %s85, %s87
      %p91 = scmp.eq.s32.totalorder %s25, 0
      %p92 = por %p90, %p91
      %p93 = scmp.ne.s32.totalorder %s85, %s87
      %p94 = scmp.eq.s32.totalorder %s30, 1
      %p95 = por %p93, %p94
      %p96 = scmp.ne.s32.totalorder %s87, %s88
      %p97 = scmp.eq.s32.totalorder %s30, 0
      %p98 = por %p96, %p97
      %p99 = scmp.ne.s32.totalorder %s87, %s88
      %p100 = scmp.eq.s32.totalorder %s31, 1
      %p101 = por %p99, %p100
      %p103 = scmp.ne.s32.totalorder %s88, %s102
      %p104 = scmp.eq.s32.totalorder %s31, 0
      %p105 = por %p103, %p104
      %s107 = sadd.s32 %s106, 1
      %p110 = scmp.eq.s32.totalorder %s25, 1
      %p111 = scmp.ne.s32.totalorder %s106, %s108
      %p112 = scmp.eq.s32.totalorder %s25, 0
      %p113 = por %p111, %p112
      %p114 = scmp.ne.s32.totalorder %s106, %s108
      %p115 = scmp.eq.s32.totalorder %s30, 1
      %p116 = por %p114, %p115
      %p117 = scmp.ne.s32.totalorder %s108, %s109
      %p118 = scmp.eq.s32.totalorder %s30, 0
      %p119 = por %p117, %p118
      %p120 = scmp.ne.s32.totalorder %s108, %s109
      %p121 = scmp.eq.s32.totalorder %s31, 1
      %p122 = por %p120, %p121
      %p124 = scmp.ne.s32.totalorder %s109, %s123
      %p125 = scmp.eq.s32.totalorder %s31, 0
      %p126 = por %p124, %p125
      %s128 = sadd.s32 %s127, 1
      %p131 = scmp.eq.s32.totalorder %s25, 1
      %p132 = scmp.ne.s32.totalorder %s127, %s129
      %p133 = scmp.eq.s32.totalorder %s25, 0
      %p134 = por %p132, %p133
      %p135 = scmp.ne.s32.totalorder %s127, %s129
      %p136 = scmp.eq.s32.totalorder %s30, 1
      %p137 = por %p135, %p136
      %p138 = scmp.ne.s32.totalorder %s129, %s130
      %p139 = scmp.eq.s32.totalorder %s30, 0
      %p140 = por %p138, %p139
      %p141 = scmp.ne.s32.totalorder %s129, %s130
      %p142 = scmp.eq.s32.totalorder %s31, 1
      %p143 = por %p141, %p142
      %p145 = scmp.ne.s32.totalorder %s130, %s144
      %p146 = scmp.eq.s32.totalorder %s31, 0
      %p147 = por %p145, %p146
      %s149 = sadd.s32 %s148, 1
      %p152 = scmp.eq.s32.totalorder %s25, 1
      %p153 = scmp.ne.s32.totalorder %s148, %s150
      %p154 = scmp.eq.s32.totalorder %s25, 0
      %p155 = por %p153, %p154
      %p156 = scmp.ne.s32.totalorder %s148, %s150
      %p157 = scmp.eq.s32.totalorder %s30, 1
      %p158 = por %p156, %p157
      %p159 = scmp.ne.s32.totalorder %s150, %s151
      %p160 = scmp.eq.s32.totalorder %s30, 0
      %p161 = por %p159, %p160
      %p162 = scmp.ne.s32.totalorder %s150, %s151
      %p163 = scmp.eq.s32.totalorder %s31, 1
      %p164 = por %p162, %p163
      %p166 = scmp.ne.s32.totalorder %s151, %s165
      %p167 = scmp.eq.s32.totalorder %s31, 0
      %p168 = por %p166, %p167
      %s170 = sadd.s32 %s169, 1
      %p173 = scmp.eq.s32.totalorder %s25, 1
      %p174 = scmp.ne.s32.totalorder %s169, %s171
      %p175 = scmp.eq.s32.totalorder %s25, 0
      %p176 = por %p174, %p175
      %p177 = scmp.ne.s32.totalorder %s169, %s171
      %p178 = scmp.eq.s32.totalorder %s30, 1
      %p179 = por %p177, %p178
      %p180 = scmp.ne.s32.totalorder %s171, %s172
      %p181 = scmp.eq.s32.totalorder %s30, 0
      %p182 = por %p180, %p181
      %p183 = scmp.ne.s32.totalorder %s171, %s172
      %p184 = scmp.eq.s32.totalorder %s31, 1
      %p185 = por %p183, %p184
      %p187 = scmp.ne.s32.totalorder %s172, %s186
      %p188 = scmp.eq.s32.totalorder %s31, 0
      %p189 = por %p187, %p188
      %s191 = sadd.s32 %s190, 1
      %p194 = scmp.eq.s32.totalorder %s25, 1
      %p195 = scmp.ne.s32.totalorder %s190, %s192
      %p196 = scmp.eq.s32.totalorder %s25, 0
      %p197 = por %p195, %p196
      %p198 = scmp.ne.s32.totalorder %s190, %s192
      %p199 = scmp.eq.s32.totalorder %s30, 1
      %p200 = por %p198, %p199
      %p201 = scmp.ne.s32.totalorder %s192, %s193
      %p202 = scmp.eq.s32.totalorder %s30, 0
      %p203 = por %p201, %p202
      %p204 = scmp.ne.s32.totalorder %s192, %s193
      %p205 = scmp.eq.s32.totalorder %s31, 1
      %p206 = por %p204, %p205
      %p208 = scmp.ne.s32.totalorder %s193, %s207
      %p209 = scmp.eq.s32.totalorder %s31, 0
      %p210 = por %p208, %p209
      %s212 = sadd.s32 %s211, 1
      %p215 = scmp.eq.s32.totalorder %s25, 1
      %p216 = scmp.ne.s32.totalorder %s211, %s213
      %p217 = scmp.eq.s32.totalorder %s25, 0
      %p218 = por %p216, %p217
      %p219 = scmp.ne.s32.totalorder %s211, %s213
      %p220 = scmp.eq.s32.totalorder %s30, 1
      %p221 = por %p219, %p220
      %p222 = scmp.ne.s32.totalorder %s213, %s214
      %p223 = scmp.eq.s32.totalorder %s30, 0
      %p224 = por %p222, %p223
      %p225 = scmp.ne.s32.totalorder %s213, %s214
      %p226 = scmp.eq.s32.totalorder %s31, 1
      %p227 = por %p225, %p226
      %p229 = scmp.ne.s32.totalorder %s214, %s228
      %p230 = scmp.eq.s32.totalorder %s31, 0
      %p231 = por %p229, %p230
      %s233 = sadd.s32 %s232, 1
      %p236 = scmp.eq.s32.totalorder %s25, 1
      %p237 = scmp.ne.s32.totalorder %s232, %s234
      %p238 = scmp.eq.s32.totalorder %s25, 0
      %p239 = por %p237, %p238
      %p240 = scmp.ne.s32.totalorder %s232, %s234
      %p241 = scmp.eq.s32.totalorder %s30, 1
      %p242 = por %p240, %p241
      %p243 = scmp.ne.s32.totalorder %s234, %s235
      %p244 = scmp.eq.s32.totalorder %s30, 0
      %p245 = por %p243, %p244
      %p246 = scmp.ne.s32.totalorder %s234, %s235
      %p247 = scmp.eq.s32.totalorder %s31, 1
      %p248 = por %p246, %p247
      %p250 = scmp.ne.s32.totalorder %s235, %s249
      %p251 = scmp.eq.s32.totalorder %s31, 0
      %p252 = por %p250, %p251
      %s254 = sadd.s32 %s253, 1
      %p257 = scmp.eq.s32.totalorder %s25, 1
      %p258 = scmp.ne.s32.totalorder %s253, %s255
      %p259 = scmp.eq.s32.totalorder %s25, 0
      %p260 = por %p258, %p259
      %p261 = scmp.ne.s32.totalorder %s253, %s255
      %p262 = scmp.eq.s32.totalorder %s30, 1
      %p263 = por %p261, %p262
      %p264 = scmp.ne.s32.totalorder %s255, %s256
      %p265 = scmp.eq.s32.totalorder %s30, 0
      %p266 = por %p264, %p265
      %p267 = scmp.ne.s32.totalorder %s255, %s256
      %p268 = scmp.eq.s32.totalorder %s31, 1
      %p269 = por %p267, %p268
      %p271 = scmp.ne.s32.totalorder %s256, %s270
      %p272 = scmp.eq.s32.totalorder %s31, 0
      %p273 = por %p271, %p272
      %s275 = sadd.s32 %s274, 1
      %p278 = scmp.eq.s32.totalorder %s25, 1
      %p279 = scmp.ne.s32.totalorder %s274, %s276
      %p280 = scmp.eq.s32.totalorder %s25, 0
      %p281 = por %p279, %p280
      %p282 = scmp.ne.s32.totalorder %s274, %s276
      %p283 = scmp.eq.s32.totalorder %s30, 1
      %p284 = por %p282, %p283
      %p285 = scmp.ne.s32.totalorder %s276, %s277
      %p286 = scmp.eq.s32.totalorder %s30, 0
      %p287 = por %p285, %p286
      %p288 = scmp.ne.s32.totalorder %s276, %s277
      %p289 = scmp.eq.s32.totalorder %s31, 1
      %p290 = por %p288, %p289
      %p292 = scmp.ne.s32.totalorder %s277, %s291
      %p293 = scmp.eq.s32.totalorder %s31, 0
      %p294 = por %p292, %p293
      %s296 = sadd.s32 %s295, 1
      %p299 = scmp.eq.s32.totalorder %s25, 1
      %p300 = scmp.ne.s32.totalorder %s295, %s297
      %p301 = scmp.eq.s32.totalorder %s25, 0
      %p302 = por %p300, %p301
      %p303 = scmp.ne.s32.totalorder %s295, %s297
      %p304 = scmp.eq.s32.totalorder %s30, 1
      %p305 = por %p303, %p304
      %p306 = scmp.ne.s32.totalorder %s297, %s298
      %p307 = scmp.eq.s32.totalorder %s30, 0
      %p308 = por %p306, %p307
      %p309 = scmp.ne.s32.totalorder %s297, %s298
      %p310 = scmp.eq.s32.totalorder %s31, 1
      %p311 = por %p309, %p310
      %p313 = scmp.ne.s32.totalorder %s298, %s312
      %p314 = scmp.eq.s32.totalorder %s31, 0
      %p315 = por %p313, %p314
      %s316 = ssub.s32 %s25, %s32
      %p317 = scmp.eq.s32.totalorder %s316, 0
      %s319 = sadd.s32 %s318, 1
      %s320 = scalar_select %p317, %s318, %s319
      %p323 = pneg %p317
      %p324 = scmp.eq.s32.totalorder %s25, 1
      %p325 = por %p323, %p324
      %p326 = scmp.ne.s32.totalorder %s318, %s321
      %p327 = scmp.eq.s32.totalorder %s25, 0
      %p328 = por %p326, %p327
      %p329 = scmp.ne.s32.totalorder %s318, %s321
      %p330 = scmp.eq.s32.totalorder %s30, 1
      %p331 = por %p329, %p330
      %p332 = scmp.ne.s32.totalorder %s321, %s322
      %p333 = scmp.eq.s32.totalorder %s30, 0
      %p334 = por %p332, %p333
      %p335 = scmp.ne.s32.totalorder %s321, %s322
      %p336 = scmp.eq.s32.totalorder %s31, 1
      %p337 = por %p335, %p336
      %p339 = scmp.ne.s32.totalorder %s322, %s338
      %p340 = scmp.eq.s32.totalorder %s31, 0
      %p341 = por %p339, %p340
      %p342 = scmp.le.s32.totalorder 1, %s25
      %p343 = scmp.lt.s32.totalorder %s25, 3
      %p344 = pnand %p342, %p343
      %p345 = pneg %p344
      // Predicated region
      $region9: #{tpu_custom_call.1} parent=5 // pred_check
        _
      $region10: #{tpu_custom_call.1} parent=5 // pred_check_branch
        %347 = sbr.rel (%p344) target = $region12
      $region11: #{tpu_custom_call.1} parent=5 // pred_region
        %s348 = ssub.s32 %s25, 1
        // Predicated region
        $region13: #{tpu_custom_call.1} parent=11 // pred_check
          %p349 = pneg %p98
        $region14: #{tpu_custom_call.1} parent=11 // pred_check_branch
          %351 = sbr.rel (%p349) target = $region16
        $region15: #{tpu_custom_call.1} parent=11 // pred_region
          %s353 = ssub.s32 256, 256
          %354 = vsyncadd [#allocation3], %s353
          %s355 = sshll.u32 [#allocation2], 4
          %s356 = int_to_ptr.vmem [resolvable:$true] %s355
          %361 = dma.hbm_to_vmem [thread:$0]  %s2, 256, %s356, [#allocation3], 64, 64, 4
        $region16: #{tpu_custom_call.1} parent=11 // pred_fallthru
          _
        // Predicated region
        $region17: #{tpu_custom_call.1} parent=11 // pred_check
          %p362 = pneg %p119
        $region18: #{tpu_custom_call.1} parent=11 // pred_check_branch
          %364 = sbr.rel (%p362) target = $region20
        $region19: #{tpu_custom_call.1} parent=11 // pred_region
          _
        $region20: #{tpu_custom_call.1} parent=11 // pred_fallthru
          _
        // Predicated region
        $region21: #{tpu_custom_call.1} parent=11 // pred_check
          %p365 = pneg %p140
        $region22: #{tpu_custom_call.1} parent=11 // pred_check_branch
          %367 = sbr.rel (%p365) target = $region24
        $region23: #{tpu_custom_call.1} parent=11 // pred_region
          _
        $region24: #{tpu_custom_call.1} parent=11 // pred_fallthru
          _
        // Predicated region
        $region25: #{tpu_custom_call.1} parent=11 // pred_check
          %p368 = pneg %p161
        $region26: #{tpu_custom_call.1} parent=11 // pred_check_branch
          %370 = sbr.rel (%p368) target = $region28
        $region27: #{tpu_custom_call.1} parent=11 // pred_region
          %s372 = ssub.s32 1024, 1024
          %373 = vsyncadd [#allocation6], %s372
          %s374 = sshll.u32 [#allocation5], 4
          %s375 = int_to_ptr.vmem [resolvable:$true] %s374
          %380 = dma.hbm_to_vmem [thread:$0]  %s5, 1024, %s375, [#allocation6], 64, 64, 4
        $region28: #{tpu_custom_call.1} parent=11 // pred_fallthru
          _
        // Predicated region
        $region29: #{tpu_custom_call.1} parent=11 // pred_check
          %p381 = pneg %p182
        $region30: #{tpu_custom_call.1} parent=11 // pred_check_branch
          %383 = sbr.rel (%p381) target = $region32
        $region31: #{tpu_custom_call.1} parent=11 // pred_region
          _
        $region32: #{tpu_custom_call.1} parent=11 // pred_fallthru
          _
        // Predicated region
        $region33: #{tpu_custom_call.1} parent=11 // pred_check
          %p384 = pneg %p203
        $region34: #{tpu_custom_call.1} parent=11 // pred_check_branch
          %386 = sbr.rel (%p384) target = $region36
        $region35: #{tpu_custom_call.1} parent=11 // pred_region
          %s388 = ssub.s32 1024, 1024
          %389 = vsyncadd [#allocation6], %s388
          %s390 = sshll.u32 [#allocation7], 4
          %s391 = int_to_ptr.vmem [resolvable:$true] %s390
          %396 = dma.hbm_to_vmem [thread:$0]  %s7, 1024, %s391, [#allocation6], 64, 64, 4
        $region36: #{tpu_custom_call.1} parent=11 // pred_fallthru
          _
        // Predicated region
        $region37: #{tpu_custom_call.1} parent=11 // pred_check
          %p397 = pneg %p224
        $region38: #{tpu_custom_call.1} parent=11 // pred_check_branch
          %399 = sbr.rel (%p397) target = $region40
        $region39: #{tpu_custom_call.1} parent=11 // pred_region
          _
        $region40: #{tpu_custom_call.1} parent=11 // pred_fallthru
          _
        // Predicated region
        $region41: #{tpu_custom_call.1} parent=11 // pred_check
          %p400 = pneg %p245
        $region42: #{tpu_custom_call.1} parent=11 // pred_check_branch
          %402 = sbr.rel (%p400) target = $region44
        $region43: #{tpu_custom_call.1} parent=11 // pred_region
          %s404 = ssub.s32 1024, 1024
          %405 = vsyncadd [#allocation9], %s404
          %s406 = sshll.u32 [#allocation8], 4
          %s407 = int_to_ptr.vmem [resolvable:$true] %s406
          %412 = dma.hbm_to_vmem [thread:$0]  %s9, 1024, %s407, [#allocation9], 64, 64, 4
        $region44: #{tpu_custom_call.1} parent=11 // pred_fallthru
          _
        // Predicated region
        $region45: #{tpu_custom_call.1} parent=11 // pred_check
          %p413 = pneg %p266
        $region46: #{tpu_custom_call.1} parent=11 // pred_check_branch
          %415 = sbr.rel (%p413) target = $region48
        $region47: #{tpu_custom_call.1} parent=11 // pred_region
          _
        $region48: #{tpu_custom_call.1} parent=11 // pred_fallthru
          _
        // Predicated region
        $region49: #{tpu_custom_call.1} parent=11 // pred_check
          %p416 = pneg %p287
        $region50: #{tpu_custom_call.1} parent=11 // pred_check_branch
          %418 = sbr.rel (%p416) target = $region52
        $region51: #{tpu_custom_call.1} parent=11 // pred_region
          _
        $region52: #{tpu_custom_call.1} parent=11 // pred_fallthru
          _
        // Predicated region
        $region53: #{tpu_custom_call.1} parent=11 // pred_check
          %p419 = pneg %p308
        $region54: #{tpu_custom_call.1} parent=11 // pred_check_branch
          %421 = sbr.rel (%p419) target = $region56
        $region55: #{tpu_custom_call.1} parent=11 // pred_region
          _
        $region56: #{tpu_custom_call.1} parent=11 // pred_fallthru
          _
      $region12: #{tpu_custom_call.1} parent=5 // pred_fallthru
        _
      %p422 = scmp.lt.s32.totalorder %s25, 2
      // Predicated region
      $region57: #{tpu_custom_call.1} parent=5 // pred_check
        %p423 = pneg %p422
      $region58: #{tpu_custom_call.1} parent=5 // pred_check_branch
        %425 = sbr.rel (%p423) target = $region60
      $region59: #{tpu_custom_call.1} parent=5 // pred_region
        // Predicated region
        $region61: #{tpu_custom_call.1} parent=59 // pred_check
          %p426 = pneg %p45
        $region62: #{tpu_custom_call.1} parent=59 // pred_check_branch
          %428 = sbr.rel (%p426) target = $region64
        $region63: #{tpu_custom_call.1} parent=59 // pred_region
          %s429 = smul.u32 2, %s25
          %p430 = scmp.lt.s32.totalorder %s429, 3
          %s431 = scalar_select %p430, %s429, 3
          %s432 = smul.addr %s431, 4
          %s433 = scalar_lea.vmem %s0, %s432
          %s434 = smul.u32 2, %s25
        $region64: #{tpu_custom_call.1} parent=59 // pred_fallthru
          _
        // Predicated region
        $region65: #{tpu_custom_call.1} parent=59 // pred_check
          %p435 = pneg %p71
        $region66: #{tpu_custom_call.1} parent=59 // pred_check_branch
          %437 = sbr.rel (%p435) target = $region68
        $region67: #{tpu_custom_call.1} parent=59 // pred_region
          %s438 = smul.u32 2, %s25
          %p439 = scmp.lt.s32.totalorder %s438, 3
          %s440 = scalar_select %p439, %s438, 3
          %s441 = smul.addr %s440, 4
          %s442 = scalar_lea.vmem %s1, %s441
          %s443 = smul.u32 2, %s25
        $region68: #{tpu_custom_call.1} parent=59 // pred_fallthru
          _
      $region60: #{tpu_custom_call.1} parent=5 // pred_fallthru
        _
      %p444 = scmp.le.s32.totalorder 1, %s25
      %p445 = scmp.lt.s32.totalorder %s25, 3
      %p446 = pnand %p444, %p445
      %p447 = pneg %p446
      // Predicated region
      $region69: #{tpu_custom_call.1} parent=5 // pred_check
        _
      $region70: #{tpu_custom_call.1} parent=5 // pred_check_branch
        %449 = sbr.rel (%p446) target = $region72
      $region71: #{tpu_custom_call.1} parent=5 // pred_region
        %s450 = ssub.s32 %s25, 1
        // Predicated region
        $region73: #{tpu_custom_call.1} parent=71 // pred_check
          %p451 = pneg %p98
        $region74: #{tpu_custom_call.1} parent=71 // pred_check_branch
          %453 = sbr.rel (%p451) target = $region76
        $region75: #{tpu_custom_call.1} parent=71 // pred_region
          %454 = dma.done [#allocation3], 256
        $region76: #{tpu_custom_call.1} parent=71 // pred_fallthru
          _
        // Predicated region
        $region77: #{tpu_custom_call.1} parent=71 // pred_check
          %p455 = pneg %p161
        $region78: #{tpu_custom_call.1} parent=71 // pred_check_branch
          %457 = sbr.rel (%p455) target = $region80
        $region79: #{tpu_custom_call.1} parent=71 // pred_region
          %458 = dma.done [#allocation6], 1024
        $region80: #{tpu_custom_call.1} parent=71 // pred_fallthru
          _
        // Predicated region
        $region81: #{tpu_custom_call.1} parent=71 // pred_check
          %p459 = pneg %p203
        $region82: #{tpu_custom_call.1} parent=71 // pred_check_branch
          %461 = sbr.rel (%p459) target = $region84
        $region83: #{tpu_custom_call.1} parent=71 // pred_region
          %462 = dma.done [#allocation6], 1024
        $region84: #{tpu_custom_call.1} parent=71 // pred_fallthru
          _
        // Predicated region
        $region85: #{tpu_custom_call.1} parent=71 // pred_check
          %p463 = pneg %p245
        $region86: #{tpu_custom_call.1} parent=71 // pred_check_branch
          %465 = sbr.rel (%p463) target = $region88
        $region87: #{tpu_custom_call.1} parent=71 // pred_region
          %466 = dma.done [#allocation9], 1024
        $region88: #{tpu_custom_call.1} parent=71 // pred_fallthru
          _
        %s467 = smul.u32 2, %s30
        %p468 = scmp.lt.s32.totalorder %s467, 3
        %s469 = scalar_select %p468, %s467, 3
        %s470 = smul.addr %s469, 4
        %s471 = scalar_lea.vmem %s0, %s470
        %p472 = pneg %p51
        %p473 = pneg %p48
        %s474 = smul.u32 2, %s30
        %p475 = scmp.lt.s32.totalorder %s474, 3
        %s476 = scalar_select %p475, %s474, 3
        %s477 = smul.addr %s476, 4
        %s478 = scalar_lea.vmem %s1, %s477
        %p479 = pneg %p77
        %p480 = pneg %p74
        %p481 = pneg %p98
        %p482 = pneg %p95
        %p483 = pneg %p119
        %p484 = pneg %p116
        %p485 = pneg %p140
        %p486 = pneg %p137
        %p487 = pneg %p161
        %p488 = pneg %p158
        %p489 = pneg %p182
        %p490 = pneg %p179
        %p491 = pneg %p203
        %p492 = pneg %p200
        %p493 = pneg %p224
        %p494 = pneg %p221
        %p495 = pneg %p245
        %p496 = pneg %p242
        %p497 = pneg %p266
        %p498 = pneg %p263
        %p499 = pneg %p287
        %p500 = pneg %p284
        %p501 = pneg %p308
        %p502 = pneg %p305
        %p503 = pneg %p334
        %p504 = pneg %p331
        %s505 = sand.u32 %s321, 1
        %s506 = scalar_lea.sflag [#allocation4], %s505
        %s507 = sand.u32 %s321, 1
        %s508 = smul.addr %s507, 8
        %s509 = scalar_lea.vmem [#allocation10], %s508
        %s510 = smul.u32 2, %s30
        %p511 = scmp.lt.s32.totalorder %s510, 3
        %s512 = scalar_select %p511, %s510, 3
        %s513 = smul.addr %s512, 4
        %s514 = scalar_lea.vmem %s0, %s513
        %s515 = smul.u32 2, %s30
        %s516 = smul.u32 2, %s30
        %p517 = scmp.lt.s32.totalorder %s516, 3
        %s518 = scalar_select %p517, %s516, 3
        %s519 = smul.addr %s518, 4
        %s520 = scalar_lea.vmem %s1, %s519
        %s521 = smul.u32 2, %s30
        %s522 = smul.u32 2, %s30
        %v524 = vld [vmem:[%s514] sm:$0xf]
        %v525 = vld [vmem:[%s514 + $0x4] sm:$0xf]
        %v526 = vld [vmem:[#allocation2] sm:$0xf]
        %v527 = vld [vmem:[#allocation2 + $0x4] sm:$0xf]
        %v528 = vld [vmem:[#allocation2 + $0x8] sm:$0xf]
        %v529 = vld [vmem:[#allocation2 + $0xc] sm:$0xf]
        %v530 = vld [vmem:[%s520] sm:$0xf]
        %v531 = vld [vmem:[%s520 + $0x4] sm:$0xf]
        %v532 = vld [vmem:[%s3] sm:$0xf]
        %v533 = vld [vmem:[%s3 + $0x4] sm:$0xf]
        %v536 = vunpack.c.l.b16 %v530
        %v537 = vunpack.c.l.b16 %v531
        %v538 = vpack.c.b16 %v537, %v536
        %v541 = vunpack.c.l.b16 %v532
        %v542 = vunpack.c.l.b16 %v533
        %v543 = vpack.c.b16 %v542, %v541
        %vm545 = vcmask 130048
        %v547 = vsel %vm545, %v538, 0
        %549 = vmatprep.subr.bf16.mxu0 0
        %550 = vmatpush1.bf16.msra.mxu0 0
        %551 = vmatprep.subr.bf16.mxu0 0
        %552 = vmatpush1.bf16.msra.mxu0 0
        %553 = vmatprep.subr.bf16.mxu0 0
        %554 = vmatpush1.bf16.msra.mxu0 0
        %555 = vmatprep.subr.bf16.mxu0 0
        %556 = vmatpush1.bf16.msra.mxu0 0
        %557 = vmatprep.subr.bf16.mxu0 0
        %558 = vmatpush1.bf16.msra.mxu0 0
        %559 = vmatprep.subr.bf16.mxu0 0
        %560 = vmatpush1.bf16.msra.mxu0 0
        %561 = vmatprep.subr.bf16.mxu0 0
        %562 = vmatpush1.bf16.msra.mxu0 0
        %563 = vmatprep.subr.bf16.mxu0 0
        %564 = vmatpush1.bf16.msra.mxu0 %v543
        %565 = vmatprep.subr.bf16.mxu0 0
        %566 = vmatpush2.bf16.msra.mxu0 0
        %567 = vmatprep.subr.bf16.mxu0 0
        %568 = vmatpush2.bf16.msra.mxu0 0
        %569 = vmatprep.subr.bf16.mxu0 0
        %570 = vmatpush2.bf16.msra.mxu0 0
        %571 = vmatprep.subr.bf16.mxu0 0
        %572 = vmatpush2.bf16.msra.mxu0 0
        %573 = vmatprep.subr.bf16.mxu0 0
        %574 = vmatpush2.bf16.msra.mxu0 0
        %575 = vmatprep.subr.bf16.mxu0 0
        %576 = vmatpush2.bf16.msra.mxu0 0
        %577 = vmatprep.subr.bf16.mxu0 0
        %578 = vmatpush2.bf16.msra.mxu0 0
        %579 = vmatprep.subr.bf16.mxu0 0
        %580 = vmatpush2.bf16.msra.mxu0 0
        %581 = vmatprep.mubr.bf16.mxu0 0
        %582 = vmatmul.mubr.bf16.gmra.mxu0 %v547
        %v583 = vpop.f32.mrf.mxu0
        %v584 = vadd.f32 0.0, %v583
        %v585 = vpop.f32.mrf.mxu0
        %v586 = vpop.f32.mrf.mxu0
        %v587 = vadd.f32 0.0, %v586
        %v588 = vpop.f32.mrf.mxu0
        %589 = vdwg.mxu0
        %v592 = vunpack.c.l.b16 %v524
        %v593 = vunpack.c.l.b16 %v525
        %v594 = vpack.c.b16 %v593, %v592
        %v599 = vunpack.c.l.b16 %v526
        %v600 = vunpack.c.l.b16 %v527
        %v601 = vunpack.c.l.b16 %v528
        %v602 = vunpack.c.l.b16 %v529
        %v603 = vpack.c.b16 %v600, %v599
        %v604 = vpack.c.b16 %v602, %v601
        %vm607 = vcmask 261120
        %v609 = vsel %vm607, %v594, 0
        %611 = vmatprep.subr.bf16.mxu0 0
        %612 = vmatpush1.bf16.msra.mxu0 0
        %613 = vmatprep.subr.bf16.mxu0 0
        %614 = vmatpush1.bf16.msra.mxu0 0
        %615 = vmatprep.subr.bf16.mxu0 0
        %616 = vmatpush1.bf16.msra.mxu0 0
        %617 = vmatprep.subr.bf16.mxu0 0
        %618 = vmatpush1.bf16.msra.mxu0 0
        %619 = vmatprep.subr.bf16.mxu0 0
        %620 = vmatpush1.bf16.msra.mxu0 0
        %621 = vmatprep.subr.bf16.mxu0 0
        %622 = vmatpush1.bf16.msra.mxu0 0
        %623 = vmatprep.subr.bf16.mxu0 0
        %624 = vmatpush1.bf16.msra.mxu0 %v604
        %625 = vmatprep.subr.bf16.mxu0 0
        %626 = vmatpush1.bf16.msra.mxu0 %v603
        %627 = vmatprep.subr.bf16.mxu0 0
        %628 = vmatpush2.bf16.msra.mxu0 0
        %629 = vmatprep.subr.bf16.mxu0 0
        %630 = vmatpush2.bf16.msra.mxu0 0
        %631 = vmatprep.subr.bf16.mxu0 0
        %632 = vmatpush2.bf16.msra.mxu0 0
        %633 = vmatprep.subr.bf16.mxu0 0
        %634 = vmatpush2.bf16.msra.mxu0 0
        %635 = vmatprep.subr.bf16.mxu0 0
        %636 = vmatpush2.bf16.msra.mxu0 0
        %637 = vmatprep.subr.bf16.mxu0 0
        %638 = vmatpush2.bf16.msra.mxu0 0
        %639 = vmatprep.subr.bf16.mxu0 0
        %640 = vmatpush2.bf16.msra.mxu0 0
        %641 = vmatprep.subr.bf16.mxu0 0
        %642 = vmatpush2.bf16.msra.mxu0 0
        %643 = vmatprep.mubr.bf16.mxu0 0
        %644 = vmatmul.mubr.bf16.gmra.mxu0 %v609
        %v645 = vpop.f32.mrf.mxu0
        %v646 = vadd.f32 %v584, %v645
        %v647 = vpop.f32.mrf.mxu0
        %v648 = vpop.f32.mrf.mxu0
        %v649 = vadd.f32 %v587, %v648
        %v650 = vpop.f32.mrf.mxu0
        %651 = vdwg.mxu0
        %v652 = vld [vmem:[%s4] sm:$0x1]
        %v654 = vlaneseq
        %v655 = vshrl.u32 %v654, 7
        %v656 = vsub.s32 0, %v655
        %v657 = vrot.slane %v652, %v656
        %v659 = vadd.f32 %v646, %v657
        %v660 = vadd.f32 %v649, %v657
        %v661 = vmul.f32 %v659, 0.2
        %v662 = vmul.f32 %v660, 0.2
        %v663 = vmax.f32 %v659, %v661
        %v664 = vmax.f32 %v660, %v662
        %v665 = vpack.c.bf16 %v664, %v663
        %v666 = vld [vmem:[#allocation5] sm:$0xf]
        %v667 = vld [vmem:[#allocation5 + $0x4] sm:$0xf]
        %v668 = vld [vmem:[#allocation5 + $0x8] sm:$0xf]
        %v669 = vld [vmem:[#allocation5 + $0xc] sm:$0xf]
        %v670 = vld [vmem:[#allocation5 + $0x10] sm:$0xf]
        %v671 = vld [vmem:[#allocation5 + $0x14] sm:$0xf]
        %v672 = vld [vmem:[#allocation5 + $0x18] sm:$0xf]
        %v673 = vld [vmem:[#allocation5 + $0x1c] sm:$0xf]
        %v674 = vld [vmem:[#allocation5 + $0x20] sm:$0xf]
        %v675 = vld [vmem:[#allocation5 + $0x24] sm:$0xf]
        %v676 = vld [vmem:[#allocation5 + $0x28] sm:$0xf]
        %v677 = vld [vmem:[#allocation5 + $0x2c] sm:$0xf]
        %v678 = vld [vmem:[#allocation5 + $0x30] sm:$0xf]
        %v679 = vld [vmem:[#allocation5 + $0x34] sm:$0xf]
        %v680 = vld [vmem:[#allocation5 + $0x38] sm:$0xf]
        %v681 = vld [vmem:[#allocation5 + $0x3c] sm:$0xf]
        %v682 = vld [vmem:[%s6] sm:$0x1]
        %v684 = vlaneseq
        %v685 = vshrl.u32 %v684, 7
        %v686 = vsub.s32 0, %v685
        %v687 = vrot.slane %v682, %v686
        %v705 = vunpack.c.l.b16 %v666
        %v706 = vunpack.c.l.b16 %v667
        %v707 = vunpack.c.l.b16 %v668
        %v708 = vunpack.c.l.b16 %v669
        %v709 = vunpack.c.l.b16 %v670
        %v710 = vunpack.c.l.b16 %v671
        %v711 = vunpack.c.l.b16 %v672
        %v712 = vunpack.c.l.b16 %v673
        %v713 = vunpack.c.l.b16 %v674
        %v714 = vunpack.c.l.b16 %v675
        %v715 = vunpack.c.l.b16 %v676
        %v716 = vunpack.c.l.b16 %v677
        %v717 = vunpack.c.l.b16 %v678
        %v718 = vunpack.c.l.b16 %v679
        %v719 = vunpack.c.l.b16 %v680
        %v720 = vunpack.c.l.b16 %v681
        %v721 = vpack.c.b16 %v706, %v705
        %v722 = vpack.c.b16 %v708, %v707
        %v723 = vpack.c.b16 %v710, %v709
        %v724 = vpack.c.b16 %v712, %v711
        %v725 = vpack.c.b16 %v714, %v713
        %v726 = vpack.c.b16 %v716, %v715
        %v727 = vpack.c.b16 %v718, %v717
        %v728 = vpack.c.b16 %v720, %v719
        %737 = vmatprep.subr.bf16.mxu0 0
        %738 = vmatpush1.bf16.msra.mxu0 %v728
        %739 = vmatprep.subr.bf16.mxu0 0
        %740 = vmatpush1.bf16.msra.mxu0 %v727
        %741 = vmatprep.subr.bf16.mxu0 0
        %742 = vmatpush1.bf16.msra.mxu0 %v726
        %743 = vmatprep.subr.bf16.mxu0 0
        %744 = vmatpush1.bf16.msra.mxu0 %v725
        %745 = vmatprep.subr.bf16.mxu0 0
        %746 = vmatpush1.bf16.msra.mxu0 %v724
        %747 = vmatprep.subr.bf16.mxu0 0
        %748 = vmatpush1.bf16.msra.mxu0 %v723
        %749 = vmatprep.subr.bf16.mxu0 0
        %750 = vmatpush1.bf16.msra.mxu0 %v722
        %751 = vmatprep.subr.bf16.mxu0 0
        %752 = vmatpush1.bf16.msra.mxu0 %v721
        %753 = vmatprep.subr.bf16.mxu0 0
        %754 = vmatpush2.bf16.msra.mxu0 0
        %755 = vmatprep.subr.bf16.mxu0 0
        %756 = vmatpush2.bf16.msra.mxu0 0
        %757 = vmatprep.subr.bf16.mxu0 0
        %758 = vmatpush2.bf16.msra.mxu0 0
        %759 = vmatprep.subr.bf16.mxu0 0
        %760 = vmatpush2.bf16.msra.mxu0 0
        %761 = vmatprep.subr.bf16.mxu0 0
        %762 = vmatpush2.bf16.msra.mxu0 0
        %763 = vmatprep.subr.bf16.mxu0 0
        %764 = vmatpush2.bf16.msra.mxu0 0
        %765 = vmatprep.subr.bf16.mxu0 0
        %766 = vmatpush2.bf16.msra.mxu0 0
        %767 = vmatprep.subr.bf16.mxu0 0
        %768 = vmatpush2.bf16.msra.mxu0 0
        %769 = vmatprep.mubr.bf16.mxu0 0
        %770 = vmatmul.mubr.bf16.gmra.mxu0 %v665
        %v771 = vpop.f32.mrf.mxu0
        %v772 = vadd.f32 %v687, %v771
        %v773 = vpop.f32.mrf.mxu0
        %v774 = vpop.f32.mrf.mxu0
        %v775 = vadd.f32 %v687, %v774
        %v776 = vpop.f32.mrf.mxu0
        %777 = vdwg.mxu0
        %v778 = vmul.f32 %v772, 0.2
        %v779 = vmul.f32 %v775, 0.2
        %v780 = vmax.f32 %v772, %v778
        %v781 = vmax.f32 %v775, %v779
        %v782 = vpack.c.bf16 %v781, %v780
        %v783 = vld [vmem:[#allocation7] sm:$0xf]
        %v784 = vld [vmem:[#allocation7 + $0x4] sm:$0xf]
        %v785 = vld [vmem:[#allocation7 + $0x8] sm:$0xf]
        %v786 = vld [vmem:[#allocation7 + $0xc] sm:$0xf]
        %v787 = vld [vmem:[#allocation7 + $0x10] sm:$0xf]
        %v788 = vld [vmem:[#allocation7 + $0x14] sm:$0xf]
        %v789 = vld [vmem:[#allocation7 + $0x18] sm:$0xf]
        %v790 = vld [vmem:[#allocation7 + $0x1c] sm:$0xf]
        %v791 = vld [vmem:[#allocation7 + $0x20] sm:$0xf]
        %v792 = vld [vmem:[#allocation7 + $0x24] sm:$0xf]
        %v793 = vld [vmem:[#allocation7 + $0x28] sm:$0xf]
        %v794 = vld [vmem:[#allocation7 + $0x2c] sm:$0xf]
        %v795 = vld [vmem:[#allocation7 + $0x30] sm:$0xf]
        %v796 = vld [vmem:[#allocation7 + $0x34] sm:$0xf]
        %v797 = vld [vmem:[#allocation7 + $0x38] sm:$0xf]
        %v798 = vld [vmem:[#allocation7 + $0x3c] sm:$0xf]
        %v799 = vld [vmem:[%s8] sm:$0x1]
        %v801 = vlaneseq
        %v802 = vshrl.u32 %v801, 7
        %v803 = vsub.s32 0, %v802
        %v804 = vrot.slane %v799, %v803
        %v822 = vunpack.c.l.b16 %v783
        %v823 = vunpack.c.l.b16 %v784
        %v824 = vunpack.c.l.b16 %v785
        %v825 = vunpack.c.l.b16 %v786
        %v826 = vunpack.c.l.b16 %v787
        %v827 = vunpack.c.l.b16 %v788
        %v828 = vunpack.c.l.b16 %v789
        %v829 = vunpack.c.l.b16 %v790
        %v830 = vunpack.c.l.b16 %v791
        %v831 = vunpack.c.l.b16 %v792
        %v832 = vunpack.c.l.b16 %v793
        %v833 = vunpack.c.l.b16 %v794
        %v834 = vunpack.c.l.b16 %v795
        %v835 = vunpack.c.l.b16 %v796
        %v836 = vunpack.c.l.b16 %v797
        %v837 = vunpack.c.l.b16 %v798
        %v838 = vpack.c.b16 %v823, %v822
        %v839 = vpack.c.b16 %v825, %v824
        %v840 = vpack.c.b16 %v827, %v826
        %v841 = vpack.c.b16 %v829, %v828
        %v842 = vpack.c.b16 %v831, %v830
        %v843 = vpack.c.b16 %v833, %v832
        %v844 = vpack.c.b16 %v835, %v834
        %v845 = vpack.c.b16 %v837, %v836
        %854 = vmatprep.subr.bf16.mxu0 0
        %855 = vmatpush1.bf16.msra.mxu0 %v845
        %856 = vmatprep.subr.bf16.mxu0 0
        %857 = vmatpush1.bf16.msra.mxu0 %v844
        %858 = vmatprep.subr.bf16.mxu0 0
        %859 = vmatpush1.bf16.msra.mxu0 %v843
        %860 = vmatprep.subr.bf16.mxu0 0
        %861 = vmatpush1.bf16.msra.mxu0 %v842
        %862 = vmatprep.subr.bf16.mxu0 0
        %863 = vmatpush1.bf16.msra.mxu0 %v841
        %864 = vmatprep.subr.bf16.mxu0 0
        %865 = vmatpush1.bf16.msra.mxu0 %v840
        %866 = vmatprep.subr.bf16.mxu0 0
        %867 = vmatpush1.bf16.msra.mxu0 %v839
        %868 = vmatprep.subr.bf16.mxu0 0
        %869 = vmatpush1.bf16.msra.mxu0 %v838
        %870 = vmatprep.subr.bf16.mxu0 0
        %871 = vmatpush2.bf16.msra.mxu0 0
        %872 = vmatprep.subr.bf16.mxu0 0
        %873 = vmatpush2.bf16.msra.mxu0 0
        %874 = vmatprep.subr.bf16.mxu0 0
        %875 = vmatpush2.bf16.msra.mxu0 0
        %876 = vmatprep.subr.bf16.mxu0 0
        %877 = vmatpush2.bf16.msra.mxu0 0
        %878 = vmatprep.subr.bf16.mxu0 0
        %879 = vmatpush2.bf16.msra.mxu0 0
        %880 = vmatprep.subr.bf16.mxu0 0
        %881 = vmatpush2.bf16.msra.mxu0 0
        %882 = vmatprep.subr.bf16.mxu0 0
        %883 = vmatpush2.bf16.msra.mxu0 0
        %884 = vmatprep.subr.bf16.mxu0 0
        %885 = vmatpush2.bf16.msra.mxu0 0
        %886 = vmatprep.mubr.bf16.mxu0 0
        %887 = vmatmul.mubr.bf16.gmra.mxu0 %v782
        %v888 = vpop.f32.mrf.mxu0
        %v889 = vadd.f32 %v804, %v888
        %v890 = vpop.f32.mrf.mxu0
        %v891 = vpop.f32.mrf.mxu0
        %v892 = vadd.f32 %v804, %v891
        %v893 = vpop.f32.mrf.mxu0
        %894 = vdwg.mxu0
        %v895 = vmul.f32 %v889, 0.2
        %v896 = vmul.f32 %v892, 0.2
        %v897 = vmax.f32 %v889, %v895
        %v898 = vmax.f32 %v892, %v896
        %v899 = vpack.c.bf16 %v898, %v897
        %v900 = vld [vmem:[#allocation8] sm:$0xf]
        %v901 = vld [vmem:[#allocation8 + $0x4] sm:$0xf]
        %v902 = vld [vmem:[#allocation8 + $0x8] sm:$0xf]
        %v903 = vld [vmem:[#allocation8 + $0xc] sm:$0xf]
        %v904 = vld [vmem:[#allocation8 + $0x10] sm:$0xf]
        %v905 = vld [vmem:[#allocation8 + $0x14] sm:$0xf]
        %v906 = vld [vmem:[#allocation8 + $0x18] sm:$0xf]
        %v907 = vld [vmem:[#allocation8 + $0x1c] sm:$0xf]
        %v908 = vld [vmem:[#allocation8 + $0x20] sm:$0xf]
        %v909 = vld [vmem:[#allocation8 + $0x24] sm:$0xf]
        %v910 = vld [vmem:[#allocation8 + $0x28] sm:$0xf]
        %v911 = vld [vmem:[#allocation8 + $0x2c] sm:$0xf]
        %v912 = vld [vmem:[#allocation8 + $0x30] sm:$0xf]
        %v913 = vld [vmem:[#allocation8 + $0x34] sm:$0xf]
        %v914 = vld [vmem:[#allocation8 + $0x38] sm:$0xf]
        %v915 = vld [vmem:[#allocation8 + $0x3c] sm:$0xf]
        %v916 = vld [vmem:[%s10] sm:$0x1]
        %v918 = vlaneseq
        %v919 = vshrl.u32 %v918, 7
        %v920 = vsub.s32 0, %v919
        %v921 = vrot.slane %v916, %v920
        %v939 = vunpack.c.l.b16 %v900
        %v940 = vunpack.c.l.b16 %v901
        %v941 = vunpack.c.l.b16 %v902
        %v942 = vunpack.c.l.b16 %v903
        %v943 = vunpack.c.l.b16 %v904
        %v944 = vunpack.c.l.b16 %v905
        %v945 = vunpack.c.l.b16 %v906
        %v946 = vunpack.c.l.b16 %v907
        %v947 = vunpack.c.l.b16 %v908
        %v948 = vunpack.c.l.b16 %v909
        %v949 = vunpack.c.l.b16 %v910
        %v950 = vunpack.c.l.b16 %v911
        %v951 = vunpack.c.l.b16 %v912
        %v952 = vunpack.c.l.b16 %v913
        %v953 = vunpack.c.l.b16 %v914
        %v954 = vunpack.c.l.b16 %v915
        %v955 = vpack.c.b16 %v940, %v939
        %v956 = vpack.c.b16 %v942, %v941
        %v957 = vpack.c.b16 %v944, %v943
        %v958 = vpack.c.b16 %v946, %v945
        %v959 = vpack.c.b16 %v948, %v947
        %v960 = vpack.c.b16 %v950, %v949
        %v961 = vpack.c.b16 %v952, %v951
        %v962 = vpack.c.b16 %v954, %v953
        %971 = vmatprep.subr.bf16.mxu0 0
        %972 = vmatpush1.bf16.msra.mxu0 %v962
        %973 = vmatprep.subr.bf16.mxu0 0
        %974 = vmatpush1.bf16.msra.mxu0 %v961
        %975 = vmatprep.subr.bf16.mxu0 0
        %976 = vmatpush1.bf16.msra.mxu0 %v960
        %977 = vmatprep.subr.bf16.mxu0 0
        %978 = vmatpush1.bf16.msra.mxu0 %v959
        %979 = vmatprep.subr.bf16.mxu0 0
        %980 = vmatpush1.bf16.msra.mxu0 %v958
        %981 = vmatprep.subr.bf16.mxu0 0
        %982 = vmatpush1.bf16.msra.mxu0 %v957
        %983 = vmatprep.subr.bf16.mxu0 0
        %984 = vmatpush1.bf16.msra.mxu0 %v956
        %985 = vmatprep.subr.bf16.mxu0 0
        %986 = vmatpush1.bf16.msra.mxu0 %v955
        %987 = vmatprep.subr.bf16.mxu0 0
        %988 = vmatpush2.bf16.msra.mxu0 0
        %989 = vmatprep.subr.bf16.mxu0 0
        %990 = vmatpush2.bf16.msra.mxu0 0
        %991 = vmatprep.subr.bf16.mxu0 0
        %992 = vmatpush2.bf16.msra.mxu0 0
        %993 = vmatprep.subr.bf16.mxu0 0
        %994 = vmatpush2.bf16.msra.mxu0 0
        %995 = vmatprep.subr.bf16.mxu0 0
        %996 = vmatpush2.bf16.msra.mxu0 0
        %997 = vmatprep.subr.bf16.mxu0 0
        %998 = vmatpush2.bf16.msra.mxu0 0
        %999 = vmatprep.subr.bf16.mxu0 0
        %1000 = vmatpush2.bf16.msra.mxu0 0
        %1001 = vmatprep.subr.bf16.mxu0 0
        %1002 = vmatpush2.bf16.msra.mxu0 0
        %1003 = vmatprep.mubr.bf16.mxu0 0
        %1004 = vmatmul.mubr.bf16.gmra.mxu0 %v899
        %v1005 = vpop.f32.mrf.mxu0
        %v1006 = vadd.f32 %v921, %v1005
        %v1007 = vpop.f32.mrf.mxu0
        %v1008 = vpop.f32.mrf.mxu0
        %v1009 = vadd.f32 %v921, %v1008
        %v1010 = vpop.f32.mrf.mxu0
        %1011 = vdwg.mxu0
        %v1012 = vld [vmem:[%s11] sm:$0x1]
        %vm1013 = vcmp.gt.f32.partialorder %v1012, 0.0
        %v1014 = vsel %vm1013, 1, 0
        %v1015 = vlaneseq
        %v1016 = vshrl.u32 %v1015, 7
        %v1017 = vsub.s32 0, %v1016
        %v1018 = vrot.slane %v1014, %v1017
        %vm1019 = vcmp.eq.s32.totalorder %v1018, 1
        %v1020 = vld [vmem:[%s12] sm:$0x1]
        %v1021 = vld [vmem:[%s12 + $0x1] sm:$0x1]
        %v1022 = vld [vmem:[%s12 + $0x2] sm:$0x1]
        %v1023 = vld [vmem:[%s12 + $0x3] sm:$0x1]
        %1024 = vrot.lane.b32.xlu0 %v1006, 1
        %v1025 = vpop.permute.xlu0 %1024
        %1026 = vrot.lane.b32.xlu0 %v1009, 1
        %v1027 = vpop.permute.xlu0 %1026
        %vm1028 = vcmp.gt.f32.partialorder %v1020, 0.0
        %v1029 = vmax.f32 %v1006, %v1025
        %v1030 = vmax.f32 %v1009, %v1027
        %v1031 = vsel %vm1028, 1, 0
        %v1032 = vlaneseq
        %v1033 = vshrl.u32 %v1032, 7
        %v1034 = vsub.s32 0, %v1033
        %v1035 = vrot.slane %v1031, %v1034
        %vm1036 = vcmp.eq.s32.totalorder %v1035, 1
        %v1037 = vsel %vm1036, %v1029, %v1006
        %v1038 = vsel %vm1036, %v1030, %v1009
        %1039 = vrot.lane.b32.xlu0 %v1006, 127
        %v1040 = vpop.permute.xlu0 %1039
        %1041 = vrot.lane.b32.xlu0 %v1009, 127
        %v1042 = vpop.permute.xlu0 %1041
        %vm1043 = vcmp.gt.f32.partialorder %v1021, 0.0
        %v1044 = vmax.f32 %v1037, %v1040
        %v1045 = vmax.f32 %v1038, %v1042
        %v1046 = vsel %vm1043, 1, 0
        %v1047 = vlaneseq
        %v1048 = vshrl.u32 %v1047, 7
        %v1049 = vsub.s32 0, %v1048
        %v1050 = vrot.slane %v1046, %v1049
        %vm1051 = vcmp.eq.s32.totalorder %v1050, 1
        %v1052 = vsel %vm1051, %v1044, %v1037
        %v1053 = vsel %vm1051, %v1045, %v1038
        %1054 = vrot.lane.b32.xlu0 %v1006, 2
        %v1055 = vpop.permute.xlu0 %1054
        %1056 = vrot.lane.b32.xlu0 %v1009, 2
        %v1057 = vpop.permute.xlu0 %1056
        %vm1058 = vcmp.gt.f32.partialorder %v1022, 0.0
        %v1059 = vmax.f32 %v1052, %v1055
        %v1060 = vmax.f32 %v1053, %v1057
        %v1061 = vsel %vm1058, 1, 0
        %v1062 = vlaneseq
        %v1063 = vshrl.u32 %v1062, 7
        %v1064 = vsub.s32 0, %v1063
        %v1065 = vrot.slane %v1061, %v1064
        %vm1066 = vcmp.eq.s32.totalorder %v1065, 1
        %v1067 = vsel %vm1066, %v1059, %v1052
        %v1068 = vsel %vm1066, %v1060, %v1053
        %1069 = vrot.lane.b32.xlu0 %v1006, 126
        %v1070 = vpop.permute.xlu0 %1069
        %1071 = vrot.lane.b32.xlu0 %v1009, 126
        %v1072 = vpop.permute.xlu0 %1071
        %vm1073 = vcmp.gt.f32.partialorder %v1023, 0.0
        %v1074 = vmax.f32 %v1067, %v1070
        %v1075 = vmax.f32 %v1068, %v1072
        %v1076 = vsel %vm1073, 1, 0
        %v1077 = vlaneseq
        %v1078 = vshrl.u32 %v1077, 7
        %v1079 = vsub.s32 0, %v1078
        %v1080 = vrot.slane %v1076, %v1079
        %vm1081 = vcmp.eq.s32.totalorder %v1080, 1
        %v1082 = vsel %vm1081, %v1074, %v1067
        %v1083 = vsel %vm1081, %v1075, %v1068
        %v1084 = vsub.f32 %v1006, %v1082
        %v1085 = vsub.f32 %v1009, %v1083
        %v1086 = vsel %vm1019, %v1084, 0.0
        %v1087 = vsel %vm1019, %v1085, 0.0
        %v1088 = vmul.f32 %v1086, 1.442695
        %v1089 = vpow.pop %v1088
        %v1090 = vmul.f32 %v1087, 1.442695
        %v1091 = vpow.pop %v1090
        %1092 = vrot.lane.b32.xlu0 %v1089, 1
        %v1093 = vpop.permute.xlu0 %1092
        %1094 = vrot.lane.b32.xlu0 %v1091, 1
        %v1095 = vpop.permute.xlu0 %1094
        %v1096 = vlaneseq
        %v1097 = vshrl.u32 %v1096, 7
        %v1098 = vsub.s32 0, %v1097
        %v1099 = vrot.slane %v1020, %v1098
        %v1100 = vmul.f32 %v1099, %v1093
        %v1101 = vmul.f32 %v1099, %v1095
        %v1102 = vadd.f32 %v1089, %v1100
        %v1103 = vadd.f32 %v1091, %v1101
        %1104 = vrot.lane.b32.xlu0 %v1089, 127
        %v1105 = vpop.permute.xlu0 %1104
        %1106 = vrot.lane.b32.xlu0 %v1091, 127
        %v1107 = vpop.permute.xlu0 %1106
        %v1108 = vlaneseq
        %v1109 = vshrl.u32 %v1108, 7
        %v1110 = vsub.s32 0, %v1109
        %v1111 = vrot.slane %v1021, %v1110
        %v1112 = vmul.f32 %v1111, %v1105
        %v1113 = vmul.f32 %v1111, %v1107
        %v1114 = vadd.f32 %v1102, %v1112
        %v1115 = vadd.f32 %v1103, %v1113
        %1116 = vrot.lane.b32.xlu0 %v1089, 2
        %v1117 = vpop.permute.xlu0 %1116
        %1118 = vrot.lane.b32.xlu0 %v1091, 2
        %v1119 = vpop.permute.xlu0 %1118
        %v1120 = vlaneseq
        %v1121 = vshrl.u32 %v1120, 7
        %v1122 = vsub.s32 0, %v1121
        %v1123 = vrot.slane %v1022, %v1122
        %v1124 = vmul.f32 %v1123, %v1117
        %v1125 = vmul.f32 %v1123, %v1119
        %v1126 = vadd.f32 %v1114, %v1124
        %v1127 = vadd.f32 %v1115, %v1125
        %1128 = vrot.lane.b32.xlu0 %v1089, 126
        %v1129 = vpop.permute.xlu0 %1128
        %1130 = vrot.lane.b32.xlu0 %v1091, 126
        %v1131 = vpop.permute.xlu0 %1130
        %v1132 = vlaneseq
        %v1133 = vshrl.u32 %v1132, 7
        %v1134 = vsub.s32 0, %v1133
        %v1135 = vrot.slane %v1023, %v1134
        %v1136 = vmul.f32 %v1135, %v1129
        %v1137 = vmul.f32 %v1135, %v1131
        %v1138 = vadd.f32 %v1126, %v1136
        %v1139 = vadd.f32 %v1127, %v1137
        %v1140 = vrcp.pop %v1138
        %v1141 = vrcp.pop %v1139
        %v1142 = vmul.f32 %v1089, %v1140
        %v1143 = vmul.f32 %v1091, %v1141
        %v1144 = vsel %vm1019, %v1142, %v1006
        %v1145 = vsel %vm1019, %v1143, %v1009
        %v1146 = vpack.c.bf16 %v1145, %v1144
        %v1148 = vunpack.c.l.b16 %v1146
        %v1149 = vunpack.c.h.b16 %v1146
        %v1150 = vpack.c.b16 %v1148, %v1148
        %v1151 = vpack.c.b16 %v1149, %v1149
        %1154 = vst [vmem:[%s509] sm:$0xf] %v1150
        %1155 = vst [vmem:[%s509 + $0x4] sm:$0xf] %v1151
        %s1156 = sand.u32 %s321, 1
        %s1157 = scalar_lea.sflag [#allocation4], %s1156
        %s1158 = sand.u32 %s321, 1
        %s1159 = smul.addr %s1158, 8
        %s1160 = scalar_lea.vmem [#allocation10], %s1159
        // Predicated region
        $region89: #{tpu_custom_call.1} parent=71 // pred_check
          %p1161 = pneg %p331
        $region90: #{tpu_custom_call.1} parent=71 // pred_check_branch
          %1163 = sbr.rel (%p1161) target = $region92
        $region91: #{tpu_custom_call.1} parent=71 // pred_region
          %s1164 = smul.u32 2, %s30
          %s1166 = ssub.s32 128, 128
          %1167 = vsyncadd %s1157, %s1166
          %s1168 = smul.addr %s1164, 64
          %s1169 = scalar_lea.hbm %s13, %s1168
          %s1170 = sshll.u32 %s1160, 4
          %s1171 = int_to_ptr.vmem [resolvable:$true] %s1170
          %1176 = dma.vmem_to_hbm [thread:$0]  %s1171, 128, %s1169, %s1157, 64, 64, 4
        $region92: #{tpu_custom_call.1} parent=71 // pred_fallthru
          _
      $region72: #{tpu_custom_call.1} parent=5 // pred_fallthru
        _
      %p1177 = scmp.le.s32.totalorder 2, %s25
      // Predicated region
      $region93: #{tpu_custom_call.1} parent=5 // pred_check
        %p1178 = pneg %p1177
      $region94: #{tpu_custom_call.1} parent=5 // pred_check_branch
        %1180 = sbr.rel (%p1178) target = $region96
      $region95: #{tpu_custom_call.1} parent=5 // pred_region
        %s1181 = ssub.s32 %s25, 2
        // Predicated region
        $region97: #{tpu_custom_call.1} parent=95 // pred_check
          %p1182 = pneg %p337
        $region98: #{tpu_custom_call.1} parent=95 // pred_check_branch
          %1184 = sbr.rel (%p1182) target = $region100
        $region99: #{tpu_custom_call.1} parent=95 // pred_region
          %s1185 = sand.u32 %s322, 1
          %s1186 = scalar_lea.sflag [#allocation4], %s1185
          %s1187 = sand.u32 %s322, 1
          %s1188 = smul.addr %s1187, 8
          %s1189 = scalar_lea.vmem [#allocation10], %s1188
          %1190 = dma.done %s1186, 128
        $region100: #{tpu_custom_call.1} parent=95 // pred_fallthru
          _
      $region96: #{tpu_custom_call.1} parent=5 // pred_fallthru
        _
    $region6: #{tpu_custom_call.1} parent=1 // loop_footer
      %s29 = sadd.s32 1, %s25
    $region7: #{tpu_custom_call.1} parent=1 // loop_footer_branch
      %24 = sbr.rel target = $region3
    $region8: #{tpu_custom_call.1} parent=1 // loop_exit
      _
    %1191 = vsyncpa [#allocation3], 1
    %s1192 = scalar_lea.sflag [#allocation3], 1
    %1193 = vsyncpa %s1192, 1
    %1194 = vsyncpa [#allocation6], 1
    %1195 = vsyncpa [#allocation9], 1
    %1196 = vsyncpa [#allocation4], 1
    %s1197 = scalar_lea.sflag [#allocation4], 1
    %1198 = vsyncpa %s1197, 1

</llo_original>
